<compile_context>
chip_gen: v7x
topology: tpu7x:2x2x1
jax: 0.10.0
libtpu: 0.0.40
codegen_flags: <defaults>
</compile_context>

<pallas_src>
import jax
import jax.numpy as jnp
from jax.experimental import pallas as pl
from jax.experimental.pallas import tpu as pltpu


# ----------------------------------------------------------------------------
# Block-size helpers (keep blocks evenly dividing and tile-aligned)
# ----------------------------------------------------------------------------
def _pick_block(n, target, align):
    """Largest b <= target with n % b == 0 and b % align == 0, else n."""
    if n <= target:
        return n
    start = target - (target % align)
    for b in range(start, align - 1, -align):
        if n % b == 0:
            return b
    return n


# ----------------------------------------------------------------------------
# Tiled dense kernel: (N, K) @ (K, M) + b, tiled over N (parallel) and K
# (arbitrary reduction) with an f32 accumulator in VMEM.
# ----------------------------------------------------------------------------
def _dense_kernel(x_ref, w_ref, b_ref, o_ref, acc_ref):
    k = pl.program_id(1)

    @pl.when(k == 0)
    def _():
        acc_ref[...] = jnp.zeros_like(acc_ref)

    acc_ref[...] += jnp.dot(
        x_ref[...].astype(w_ref.dtype), w_ref[...],
        preferred_element_type=jnp.float32)

    @pl.when(k == pl.num_programs(1) - 1)
    def _():
        o_ref[...] = (acc_ref[...] + b_ref[...]).astype(o_ref.dtype)


def dense(x, w, b, *, out_dtype=jnp.float32, row_block=256, k_block=512):
    """x: (N, K), w: (K, M), b: (1, M) -> (N, M)."""
    N, K = x.shape
    M = w.shape[1]
    bn = _pick_block(N, row_block, 8)
    bk = _pick_block(K, k_block, 128)
    # TODO(synk): for very large M (e.g. a 30k-vocab output layer) also tile M.
    return pl.pallas_call(
        _dense_kernel,
        out_shape=jax.ShapeDtypeStruct((N, M), out_dtype),
        grid_spec=pltpu.PrefetchScalarGridSpec(
            num_scalar_prefetch=0,
            grid=(N // bn, K // bk),
            in_specs=[
                pl.BlockSpec((bn, bk), lambda i, k: (i, k)),
                pl.BlockSpec((bk, M), lambda i, k: (k, 0)),
                pl.BlockSpec((1, M), lambda i, k: (0, 0)),
            ],
            out_specs=pl.BlockSpec((bn, M), lambda i, k: (i, 0)),
            scratch_shapes=[pltpu.VMEM((bn, M), jnp.float32)],
        ),
        compiler_params=pltpu.CompilerParams(
            dimension_semantics=("parallel", "arbitrary")),
    )(x, w, b)


# ----------------------------------------------------------------------------
# Fused "concat then project" kernel:
#   cat([x1, x2], -1) @ W + b == x1 @ W_top + x2 @ W_bot + b
# ----------------------------------------------------------------------------
def _dense2_kernel(x1_ref, w1_ref, x2_ref, w2_ref, b_ref, o_ref):
    acc = jnp.dot(x1_ref[...].astype(w1_ref.dtype), w1_ref[...],
                  preferred_element_type=jnp.float32)
    acc = acc + jnp.dot(x2_ref[...].astype(w2_ref.dtype), w2_ref[...],
                        preferred_element_type=jnp.float32)
    o_ref[...] = (acc + b_ref[...]).astype(o_ref.dtype)


def dense2(x1, w1, x2, w2, b, *, out_dtype=jnp.float32, row_block=256):
    N, K1 = x1.shape
    K2 = x2.shape[1]
    M = w1.shape[1]
    bn = _pick_block(N, row_block, 8)
    return pl.pallas_call(
        _dense2_kernel,
        out_shape=jax.ShapeDtypeStruct((N, M), out_dtype),
        grid_spec=pltpu.PrefetchScalarGridSpec(
            num_scalar_prefetch=0,
            grid=(N // bn,),
            in_specs=[
                pl.BlockSpec((bn, K1), lambda i: (i, 0)),
                pl.BlockSpec((K1, M), lambda i: (0, 0)),
                pl.BlockSpec((bn, K2), lambda i: (i, 0)),
                pl.BlockSpec((K2, M), lambda i: (0, 0)),
                pl.BlockSpec((1, M), lambda i: (0, 0)),
            ],
            out_specs=pl.BlockSpec((bn, M), lambda i: (i, 0)),
        ),
        compiler_params=pltpu.CompilerParams(
            dimension_semantics=("parallel",)),
    )(x1, w1, x2, w2, b)


# ----------------------------------------------------------------------------
# Fused output dense + softmax: (N, K) @ (K, M) + b, softmax over M
# ----------------------------------------------------------------------------
def _dense_softmax_kernel(x_ref, w_ref, b_ref, o_ref):
    logits = jnp.dot(x_ref[...].astype(w_ref.dtype), w_ref[...],
                     preferred_element_type=jnp.float32) + b_ref[...]
    m = jnp.max(logits, axis=-1, keepdims=True)
    e = jnp.exp(logits - m)
    o_ref[...] = (e / jnp.sum(e, axis=-1, keepdims=True)).astype(o_ref.dtype)


def dense_softmax(x, w, b, *, row_block=256):
    N, K = x.shape
    M = w.shape[1]
    bn = _pick_block(N, row_block, 8)
    return pl.pallas_call(
        _dense_softmax_kernel,
        out_shape=jax.ShapeDtypeStruct((N, M), jnp.float32),
        grid_spec=pltpu.PrefetchScalarGridSpec(
            num_scalar_prefetch=0,
            grid=(N // bn,),
            in_specs=[
                pl.BlockSpec((bn, K), lambda i: (i, 0)),
                pl.BlockSpec((K, M), lambda i: (0, 0)),
                pl.BlockSpec((1, M), lambda i: (0, 0)),
            ],
            out_specs=pl.BlockSpec((bn, M), lambda i: (i, 0)),
        ),
        compiler_params=pltpu.CompilerParams(
            dimension_semantics=("parallel",)),
    )(x, w, b)


# ----------------------------------------------------------------------------
# GRU recurrence kernel. The input projection x @ Wx + bx is PRE-computed
# (xproj, shape (B, T, 3H)); only the fused h @ Wh_packed (H, 3H) matmul and
# the gate nonlinearities run inside the serial time loop. The grid iterates
# over blocks of Tt time steps; the hidden state lives in VMEM scratch and
# persists across grid iterations. Packed gate order: [reset r | update z | n].
# ----------------------------------------------------------------------------
def gru(xproj, wh, bh, h0, *, time_block=8):
    """xproj: (B, T, 3H) f32, wh: (H, 3H), bh: (1, 3H), h0: (B, H).
    Returns (y: (B, T, H) bf16, h_final: (B, H) f32)."""
    B, T, threeH = xproj.shape
    H = wh.shape[0]
    Tt = _pick_block(T, time_block, 8)   # full T if no aligned divisor
    n_tb = T // Tt

    def kernel(xp_ref, wh_ref, bh_ref, h0_ref, y_ref, hN_ref, h_ref):
        tb = pl.program_id(0)

        @pl.when(tb == 0)
        def _():
            h_ref[...] = h0_ref[...].astype(jnp.float32)

        wh_m = wh_ref[...]            # (H, 3H), bf16 (single MXU push per step)
        bh_v = bh_ref[...]            # (1, 3H), f32
        h = h_ref[...]                # (B, H), f32

        # NOTE: weights use a constant index_map; they are still double-
        # buffered by the pipeline (acceptable at 3*H*H bf16).
        for s in range(Tt):           # static inner time loop (unrolled)
            xp = xp_ref[:, s, :]      # (B, 3H) precomputed x@Wx + bx
            hp = jnp.dot(h.astype(wh_m.dtype), wh_m,
                         preferred_element_type=jnp.float32) + bh_v
            r = jax.nn.sigmoid(xp[:, 0:H] + hp[:, 0:H])
            z = jax.nn.sigmoid(xp[:, H:2 * H] + hp[:, H:2 * H])
            n = jnp.tanh(xp[:, 2 * H:3 * H] + r * hp[:, 2 * H:3 * H])
            h = (1.0 - z) * n + z * h
            y_ref[:, s, :] = h.astype(y_ref.dtype)

        h_ref[...] = h                # carry state to next grid step

        @pl.when(tb == pl.num_programs(0) - 1)
        def _():
            hN_ref[...] = h.astype(hN_ref.dtype)

    y, h_final = pl.pallas_call(
        kernel,
        out_shape=(
            jax.ShapeDtypeStruct((B, T, H), jnp.bfloat16),
            jax.ShapeDtypeStruct((B, H), jnp.float32),
        ),
        grid_spec=pltpu.PrefetchScalarGridSpec(
            num_scalar_prefetch=0,
            grid=(n_tb,),
            in_specs=[
                pl.BlockSpec((B, Tt, threeH), lambda t: (0, t, 0)),
                pl.BlockSpec((H, threeH), lambda t: (0, 0)),
                pl.BlockSpec((1, threeH), lambda t: (0, 0)),
                pl.BlockSpec((B, H), lambda t: (0, 0)),
            ],
            out_specs=[
                pl.BlockSpec((B, Tt, H), lambda t: (0, t, 0)),
                pl.BlockSpec((B, H), lambda t: (0, 0)),
            ],
            scratch_shapes=[pltpu.VMEM((B, H), jnp.float32)],
        ),
        compiler_params=pltpu.CompilerParams(
            dimension_semantics=("arbitrary",)),   # recurrence: in-order
    )(xproj, wh, bh, h0)
    return y, h_final


# ----------------------------------------------------------------------------
# Decoder forward (teacher-forcing / dec_mode=0 == multi_step_primary_pipeline)
# ----------------------------------------------------------------------------
def decoder_forward(Y, context, initial_states, params):
    """Y: (B, T, n_tgt_inp) one-hot targets; context: (B, T, n_context);
    initial_states: (2, B, n_hid). Returns softmax probs (B, T, n_out)."""
    B, T, _ = Y.shape
    H1 = params["g1_wh"].shape[0]
    H2 = params["g2_wh"].shape[0]
    n_out = params["out_w"].shape[1]
    h0_1, h0_2 = initial_states[0], initial_states[1]

    # 1) embedding dense layer: one big (B*T, V) @ (V, E) matmul
    emb = dense(Y.reshape(B * T, -1), params["emb_w"], params["emb_b"],
                out_dtype=jnp.bfloat16)                              # (B*T, E)

    # 2) concat(emb, context) fused with GRU1's hoisted input projection
    xp1 = dense2(emb, params["g1_wx_e"],
                 context.reshape(B * T, -1), params["g1_wx_c"],
                 params["g1_bx"]).reshape(B, T, 3 * H1)              # f32

    # 3) GRU1 recurrence (only h @ Wh inside the time loop)
    y1, _h1 = gru(xp1, params["g1_wh"], params["g1_bh"], h0_1)

    # 4) GRU2: hoisted input projection, then recurrence
    xp2 = dense(y1.reshape(B * T, H1), params["g2_wx"], params["g2_bx"],
                out_dtype=jnp.float32).reshape(B, T, 3 * H2)
    y2, _h2 = gru(xp2, params["g2_wh"], params["g2_bh"], h0_2)

    # 5) output dense + softmax fused in one kernel
    out = dense_softmax(y2.reshape(B * T, H2),
                        params["out_w"], params["out_b"]).reshape(B, T, n_out)
    return out


# TODO(synk): the scheduled-sampling / stochastic / greedy / beam-search
# pipelines (dec_mode 1-4) re-feed sampled tokens step by step with Python /
# numpy control flow (topk, argmax, beam bookkeeping); they are host-side
# search loops around one_step_primary_pipeline and are not translated here.


def init_params(key, n_tgt_inp, n_context, n_emb, n_hid1, n_hid2, n_out):
    ks = iter(jax.random.split(key, 12))
    s = 0.1

    def w(shape, dtype=jnp.bfloat16):
        return (s * jax.random.normal(next(ks), shape, jnp.float32)).astype(dtype)

    return {
        # embedding dense: n_tgt_inp -> n_emb
        "emb_w": w((n_tgt_inp, n_emb)),
        "emb_b": w((1, n_emb), jnp.float32),
        # GRU1, input = concat(emb, context); packed gate order [r | z | n]
        "g1_wx_e": w((n_emb, 3 * n_hid1)),        # rows acting on emb part
        "g1_wx_c": w((n_context, 3 * n_hid1)),    # rows acting on context part
        "g1_bx": w((1, 3 * n_hid1), jnp.float32),
        "g1_wh": w((n_hid1, 3 * n_hid1)),
        "g1_bh": jnp.zeros((1, 3 * n_hid1), jnp.float32),
        # GRU2: n_hid1 -> n_hid2
        "g2_wx": w((n_hid1, 3 * n_hid2)),
        "g2_bx": w((1, 3 * n_hid2), jnp.float32),
        "g2_wh": w((n_hid2, 3 * n_hid2)),
        "g2_bh": jnp.zeros((1, 3 * n_hid2), jnp.float32),
        # output dense: n_hid2 -> n_out (softmax applied in-kernel)
        "out_w": w((n_hid2, n_out)),
        "out_b": w((1, n_out), jnp.float32),
    }


if __name__ == "__main__":
    # Small shapes consistent with the module (real module hard-codes
    # n_emb = n_hid1 = n_hid2 = 600; scaled down for a synthetic test).
    B, T = 2, 8                 # n_examples, n_max_steps
    n_tgt_inp = 16              # target vocab size (decoder input OHE width)
    n_context = 32
    n_emb = n_hid1 = n_hid2 = 32
    n_out = 16                  # source vocab size (output layer width)

    key = jax.random.PRNGKey(0)
    kp, kd, kc, kh = jax.random.split(key, 4)
    params = init_params(kp, n_tgt_inp, n_context, n_emb, n_hid1, n_hid2, n_out)

    # Target tokens in OHE (teacher forcing inputs) and a per-example context
    # vector repeated across the time axis, as the module expects.
    tokens = jax.random.randint(kd, (B, T), 0, n_tgt_inp)
    Y = jax.nn.one_hot(tokens, n_tgt_inp, dtype=jnp.float32)
    ctx_vec = 0.1 * jax.random.normal(kc, (B, 1, n_context), jnp.float32)
    context = jnp.broadcast_to(ctx_vec, (B, T, n_context))
    initial_states = 0.1 * jax.random.normal(kh, (2, B, n_hid1), jnp.float32)

    out = jax.jit(decoder_forward)(Y, context, initial_states, params)
    out = jax.block_until_ready(out)

    assert out.shape == (B, T, n_out)
    # softmax rows must sum to 1
    assert jnp.allclose(out.sum(-1), 1.0, atol=1e-3)
    print("KERNEL_OK")
</pallas_src>

<mosaic_0001>
module attributes {stable_mosaic.version = 11 : i64} {
  func.func @_dense_kernel(%arg0: i32, %arg1: i32, %arg2: memref<16x16xf32, #tpu.memory_space<vmem>>, %arg3: memref<16x32xbf16, #tpu.memory_space<vmem>>, %arg4: memref<1x32xf32, #tpu.memory_space<vmem>>, %arg5: memref<16x32xbf16, #tpu.memory_space<vmem>>, %arg6: memref<16x32xf32, #tpu.memory_space<vmem>>) attributes {dimension_semantics = [#tpu.dimension_semantics<parallel>, #tpu.dimension_semantics<arbitrary>], iteration_bounds = array<i64: 1, 1>, scalar_prefetch = 0 : i64, scratch_operands = 1 : i64, tpu.core_type = #tpu.core_type<tc>, window_params = [{transform_indices = @transform_0, window_bounds = array<i64: 16, 16>}, {transform_indices = @transform_1, window_bounds = array<i64: 16, 32>}, {pipeline_mode = #tpu.pipeline_mode<synchronous>, transform_indices = @transform_2, window_bounds = array<i64: 1, 32>}, {transform_indices = @transform_3, window_bounds = array<i64: 16, 32>}]} {
    %c0_i32 = arith.constant 0 : i32
    %0 = arith.cmpi eq, %arg1, %c0_i32 : i32
    %1 = arith.extui %0 : i1 to i32
    %c0_i32_0 = arith.constant 0 : i32
    %2 = arith.cmpi ne, %1, %c0_i32_0 : i32
    scf.if %2 {
      %cst_10 = arith.constant 0.000000e+00 : f32
      %13 = vector.broadcast %cst_10 : f32 to vector<16x32xf32>
      %c0_11 = arith.constant 0 : index
      %c0_12 = arith.constant 0 : index
      %14 = vector.load %arg6[%c0_11, %c0_12] : memref<16x32xf32, #tpu.memory_space<vmem>>, vector<16x32xf32>
      tpu.vector_store %arg6[%c0_11, %c0_12], %13 {strides = array<i32>} : memref<16x32xf32, #tpu.memory_space<vmem>>, vector<16x32xf32>,
    } else {
    }
    %c0 = arith.constant 0 : index
    %c0_1 = arith.constant 0 : index
    %3 = vector.load %arg6[%c0, %c0_1] : memref<16x32xf32, #tpu.memory_space<vmem>>, vector<16x32xf32>
    %c0_2 = arith.constant 0 : index
    %c0_3 = arith.constant 0 : index
    %4 = vector.load %arg2[%c0_2, %c0_3] : memref<16x16xf32, #tpu.memory_space<vmem>>, vector<16x16xf32>
    %5 = arith.truncf %4 : vector<16x16xf32> to vector<16x16xbf16>
    %c0_4 = arith.constant 0 : index
    %c0_5 = arith.constant 0 : index
    %6 = vector.load %arg3[%c0_4, %c0_5] : memref<16x32xbf16, #tpu.memory_space<vmem>>, vector<16x32xbf16>
    %cst = arith.constant dense<0.000000e+00> : vector<16x32xf32>
    %7 = tpu.matmul %5, %6, %cst {dimension_numbers = #tpu.dot_dimension_numbers<[1], [0], [0], [1], [0, 0, 1, 1], [], []>} : vector<16x16xbf16>, vector<16x32xbf16>, vector<16x32xf32> -> vector<16x32xf32>
    %8 = arith.addf %3, %7 : vector<16x32xf32>
    %c0_6 = arith.constant 0 : index
    %c0_7 = arith.constant 0 : index
    %9 = vector.load %arg6[%c0_6, %c0_7] : memref<16x32xf32, #tpu.memory_space<vmem>>, vector<16x32xf32>
    tpu.vector_store %arg6[%c0_6, %c0_7], %8 {strides = array<i32>} : memref<16x32xf32, #tpu.memory_space<vmem>>, vector<16x32xf32>,
    %c0_i32_8 = arith.constant 0 : i32
    %10 = arith.cmpi eq, %arg1, %c0_i32_8 : i32
    %11 = arith.extui %10 : i1 to i32
    %c0_i32_9 = arith.constant 0 : i32
    %12 = arith.cmpi ne, %11, %c0_i32_9 : i32
    scf.if %12 {
      %c0_10 = arith.constant 0 : index
      %c0_11 = arith.constant 0 : index
      %13 = vector.load %arg6[%c0_10, %c0_11] : memref<16x32xf32, #tpu.memory_space<vmem>>, vector<16x32xf32>
      %c0_12 = arith.constant 0 : index
      %c0_13 = arith.constant 0 : index
      %14 = vector.load %arg4[%c0_12, %c0_13] : memref<1x32xf32, #tpu.memory_space<vmem>>, vector<1x32xf32>
      %15 = vector.broadcast %14 : vector<1x32xf32> to vector<16x32xf32>
      %16 = arith.addf %13, %15 : vector<16x32xf32>
      %17 = arith.truncf %16 : vector<16x32xf32> to vector<16x32xbf16>
      %c0_14 = arith.constant 0 : index
      %c0_15 = arith.constant 0 : index
      %18 = vector.load %arg5[%c0_14, %c0_15] : memref<16x32xbf16, #tpu.memory_space<vmem>>, vector<16x32xbf16>
      tpu.vector_store %arg5[%c0_14, %c0_15], %17 {strides = array<i32>} : memref<16x32xbf16, #tpu.memory_space<vmem>>, vector<16x32xbf16>,
    } else {
    }
    return
  }
  func.func @transform_0(%arg0: i32, %arg1: i32) -> (i32, i32) {
    %c0_i32 = arith.constant 0 : i32
    return %arg0, %arg1 : i32, i32
  }
  func.func @transform_1(%arg0: i32, %arg1: i32) -> (i32, i32) {
    %c0_i32 = arith.constant 0 : i32
    %c0_i32_0 = arith.constant 0 : i32
    return %arg1, %c0_i32 : i32, i32
  }
  func.func @transform_2(%arg0: i32, %arg1: i32) -> (i32, i32) {
    %c0_i32 = arith.constant 0 : i32
    %c0_i32_0 = arith.constant 0 : i32
    %c0_i32_1 = arith.constant 0 : i32
    return %c0_i32, %c0_i32_0 : i32, i32
  }
  func.func @transform_3(%arg0: i32, %arg1: i32) -> (i32, i32) {
    %c0_i32 = arith.constant 0 : i32
    %c0_i32_0 = arith.constant 0 : i32
    return %arg0, %c0_i32 : i32, i32
  }
}

module attributes {stable_mosaic.version = 11 : i64} {
  func.func @_dense2_kernel(%arg0: i32, %arg1: memref<16x32xbf16, #tpu.memory_space<vmem>>, %arg2: memref<32x96xbf16, #tpu.memory_space<vmem>>, %arg3: memref<16x32xf32, #tpu.memory_space<vmem>>, %arg4: memref<32x96xbf16, #tpu.memory_space<vmem>>, %arg5: memref<1x96xf32, #tpu.memory_space<vmem>>, %arg6: memref<16x96xf32, #tpu.memory_space<vmem>>) attributes {dimension_semantics = [#tpu.dimension_semantics<parallel>], iteration_bounds = array<i64: 1>, scalar_prefetch = 0 : i64, scratch_operands = 0 : i64, tpu.core_type = #tpu.core_type<tc>, window_params = [{transform_indices = @transform_0, window_bounds = array<i64: 16, 32>}, {pipeline_mode = #tpu.pipeline_mode<synchronous>, transform_indices = @transform_1, window_bounds = array<i64: 32, 96>}, {transform_indices = @transform_2, window_bounds = array<i64: 16, 32>}, {pipeline_mode = #tpu.pipeline_mode<synchronous>, transform_indices = @transform_3, window_bounds = array<i64: 32, 96>}, {pipeline_mode = #tpu.pipeline_mode<synchronous>, transform_indices = @transform_4, window_bounds = array<i64: 1, 96>}, {transform_indices = @transform_5, window_bounds = array<i64: 16, 96>}]} {
    %c0 = arith.constant 0 : index
    %c0_0 = arith.constant 0 : index
    %0 = vector.load %arg1[%c0, %c0_0] : memref<16x32xbf16, #tpu.memory_space<vmem>>, vector<16x32xbf16>
    %c0_1 = arith.constant 0 : index
    %c0_2 = arith.constant 0 : index
    %1 = vector.load %arg2[%c0_1, %c0_2] : memref<32x96xbf16, #tpu.memory_space<vmem>>, vector<32x96xbf16>
    %cst = arith.constant dense<0.000000e+00> : vector<16x96xf32>
    %2 = tpu.matmul %0, %1, %cst {dimension_numbers = #tpu.dot_dimension_numbers<[1], [0], [0], [1], [0, 0, 1, 1], [], []>} : vector<16x32xbf16>, vector<32x96xbf16>, vector<16x96xf32> -> vector<16x96xf32>
    %c0_3 = arith.constant 0 : index
    %c0_4 = arith.constant 0 : index
    %3 = vector.load %arg3[%c0_3, %c0_4] : memref<16x32xf32, #tpu.memory_space<vmem>>, vector<16x32xf32>
    %4 = arith.truncf %3 : vector<16x32xf32> to vector<16x32xbf16>
    %c0_5 = arith.constant 0 : index
    %c0_6 = arith.constant 0 : index
    %5 = vector.load %arg4[%c0_5, %c0_6] : memref<32x96xbf16, #tpu.memory_space<vmem>>, vector<32x96xbf16>
    %cst_7 = arith.constant dense<0.000000e+00> : vector<16x96xf32>
    %6 = tpu.matmul %4, %5, %cst_7 {dimension_numbers = #tpu.dot_dimension_numbers<[1], [0], [0], [1], [0, 0, 1, 1], [], []>} : vector<16x32xbf16>, vector<32x96xbf16>, vector<16x96xf32> -> vector<16x96xf32>
    %7 = arith.addf %2, %6 : vector<16x96xf32>
    %c0_8 = arith.constant 0 : index
    %c0_9 = arith.constant 0 : index
    %8 = vector.load %arg5[%c0_8, %c0_9] : memref<1x96xf32, #tpu.memory_space<vmem>>, vector<1x96xf32>
    %9 = vector.broadcast %8 : vector<1x96xf32> to vector<16x96xf32>
    %10 = arith.addf %7, %9 : vector<16x96xf32>
    %c0_10 = arith.constant 0 : index
    %c0_11 = arith.constant 0 : index
    %11 = vector.load %arg6[%c0_10, %c0_11] : memref<16x96xf32, #tpu.memory_space<vmem>>, vector<16x96xf32>
    tpu.vector_store %arg6[%c0_10, %c0_11], %10 {strides = array<i32>} : memref<16x96xf32, #tpu.memory_space<vmem>>, vector<16x96xf32>,
    return
  }
  func.func @transform_0(%arg0: i32) -> (i32, i32) {
    %c0_i32 = arith.constant 0 : i32
    %c0_i32_0 = arith.constant 0 : i32
    return %arg0, %c0_i32 : i32, i32
  }
  func.func @transform_1(%arg0: i32) -> (i32, i32) {
    %c0_i32 = arith.constant 0 : i32
    %c0_i32_0 = arith.constant 0 : i32
    %c0_i32_1 = arith.constant 0 : i32
    return %c0_i32, %c0_i32_0 : i32, i32
  }
  func.func @transform_2(%arg0: i32) -> (i32, i32) {
    %c0_i32 = arith.constant 0 : i32
    %c0_i32_0 = arith.constant 0 : i32
    return %arg0, %c0_i32 : i32, i32
  }
  func.func @transform_3(%arg0: i32) -> (i32, i32) {
    %c0_i32 = arith.constant 0 : i32
    %c0_i32_0 = arith.constant 0 : i32
    %c0_i32_1 = arith.constant 0 : i32
    return %c0_i32, %c0_i32_0 : i32, i32
  }
  func.func @transform_4(%arg0: i32) -> (i32, i32) {
    %c0_i32 = arith.constant 0 : i32
    %c0_i32_0 = arith.constant 0 : i32
    %c0_i32_1 = arith.constant 0 : i32
    return %c0_i32, %c0_i32_0 : i32, i32
  }
  func.func @transform_5(%arg0: i32) -> (i32, i32) {
    %c0_i32 = arith.constant 0 : i32
    %c0_i32_0 = arith.constant 0 : i32
    return %arg0, %c0_i32 : i32, i32
  }
}

module attributes {stable_mosaic.version = 11 : i64} {
  func.func @kernel(%arg0: i32, %arg1: memref<2x8x96xf32, #tpu.memory_space<vmem>>, %arg2: memref<32x96xbf16, #tpu.memory_space<vmem>>, %arg3: memref<1x96xf32, #tpu.memory_space<vmem>>, %arg4: memref<2x32xf32, #tpu.memory_space<vmem>>, %arg5: memref<2x8x32xbf16, #tpu.memory_space<vmem>>, %arg6: memref<2x32xf32, #tpu.memory_space<vmem>>, %arg7: memref<2x32xf32, #tpu.memory_space<vmem>>) attributes {dimension_semantics = [#tpu.dimension_semantics<arbitrary>], iteration_bounds = array<i64: 1>, scalar_prefetch = 0 : i64, scratch_operands = 1 : i64, tpu.core_type = #tpu.core_type<tc>, window_params = [{transform_indices = @transform_0, window_bounds = array<i64: 2, 8, 96>}, {pipeline_mode = #tpu.pipeline_mode<synchronous>, transform_indices = @transform_1, window_bounds = array<i64: 32, 96>}, {pipeline_mode = #tpu.pipeline_mode<synchronous>, transform_indices = @transform_2, window_bounds = array<i64: 1, 96>}, {pipeline_mode = #tpu.pipeline_mode<synchronous>, transform_indices = @transform_3, window_bounds = array<i64: 2, 32>}, {transform_indices = @transform_4, window_bounds = array<i64: 2, 8, 32>}, {pipeline_mode = #tpu.pipeline_mode<synchronous>, transform_indices = @transform_5, window_bounds = array<i64: 2, 32>}]} {
    %c0_i32 = arith.constant 0 : i32
    %0 = arith.cmpi eq, %arg0, %c0_i32 : i32
    %1 = arith.extui %0 : i1 to i32
    %c0_i32_0 = arith.constant 0 : i32
    %2 = arith.cmpi ne, %1, %c0_i32_0 : i32
    scf.if %2 {
      %c0_82 = arith.constant 0 : index
      %c0_83 = arith.constant 0 : index
      %298 = vector.load %arg4[%c0_82, %c0_83] : memref<2x32xf32, #tpu.memory_space<vmem>>, vector<2x32xf32>
      %c0_84 = arith.constant 0 : index
      %c0_85 = arith.constant 0 : index
      %299 = vector.load %arg7[%c0_84, %c0_85] : memref<2x32xf32, #tpu.memory_space<vmem>>, vector<2x32xf32>
      tpu.vector_store %arg7[%c0_84, %c0_85], %298 {strides = array<i32>} : memref<2x32xf32, #tpu.memory_space<vmem>>, vector<2x32xf32>,
    } else {
    }
    %c0 = arith.constant 0 : index
    %c0_1 = arith.constant 0 : index
    %3 = vector.load %arg2[%c0, %c0_1] : memref<32x96xbf16, #tpu.memory_space<vmem>>, vector<32x96xbf16>
    %c0_2 = arith.constant 0 : index
    %c0_3 = arith.constant 0 : index
    %4 = vector.load %arg3[%c0_2, %c0_3] : memref<1x96xf32, #tpu.memory_space<vmem>>, vector<1x96xf32>
    %c0_4 = arith.constant 0 : index
    %c0_5 = arith.constant 0 : index
    %5 = vector.load %arg7[%c0_4, %c0_5] : memref<2x32xf32, #tpu.memory_space<vmem>>, vector<2x32xf32>
    %c0_6 = arith.constant 0 : index
    %c0_7 = arith.constant 0 : index
    %c0_8 = arith.constant 0 : index
    %6 = vector.load %arg1[%c0_6, %c0_7, %c0_8] : memref<2x8x96xf32, #tpu.memory_space<vmem>>, vector<2x1x96xf32>
    %7 = vector.shape_cast %6 : vector<2x1x96xf32> to vector<2x96xf32>
    %8 = arith.truncf %5 : vector<2x32xf32> to vector<2x32xbf16>
    %cst = arith.constant dense<0.000000e+00> : vector<2x96xf32>
    %9 = tpu.matmul %8, %3, %cst {dimension_numbers = #tpu.dot_dimension_numbers<[1], [0], [0], [1], [0, 0, 1, 1], [], []>} : vector<2x32xbf16>, vector<32x96xbf16>, vector<2x96xf32> -> vector<2x96xf32>
    %10 = vector.broadcast %4 : vector<1x96xf32> to vector<2x96xf32>
    %11 = arith.addf %9, %10 : vector<2x96xf32>
    %12 = vector.extract_strided_slice %7 {offsets = [0, 0], sizes = [2, 32], strides = [1, 1]} : vector<2x96xf32> to vector<2x32xf32>
    %13 = vector.extract_strided_slice %11 {offsets = [0, 0], sizes = [2, 32], strides = [1, 1]} : vector<2x96xf32> to vector<2x32xf32>
    %14 = arith.addf %12, %13 : vector<2x32xf32>
    %15 = arith.negf %14 : vector<2x32xf32>
    %16 = math.exp %15 : vector<2x32xf32>
    %cst_9 = arith.constant 1.000000e+00 : f32
    %17 = vector.broadcast %cst_9 : f32 to vector<2x32xf32>
    %18 = arith.addf %17, %16 : vector<2x32xf32>
    %19 = arith.divf %17, %18 : vector<2x32xf32>
    %20 = vector.extract_strided_slice %7 {offsets = [0, 32], sizes = [2, 32], strides = [1, 1]} : vector<2x96xf32> to vector<2x32xf32>
    %21 = vector.extract_strided_slice %11 {offsets = [0, 32], sizes = [2, 32], strides = [1, 1]} : vector<2x96xf32> to vector<2x32xf32>
    %22 = arith.addf %20, %21 : vector<2x32xf32>
    %23 = arith.negf %22 : vector<2x32xf32>
    %24 = math.exp %23 : vector<2x32xf32>
    %cst_10 = arith.constant 1.000000e+00 : f32
    %25 = vector.broadcast %cst_10 : f32 to vector<2x32xf32>
    %26 = arith.addf %25, %24 : vector<2x32xf32>
    %27 = arith.divf %25, %26 : vector<2x32xf32>
    %28 = vector.extract_strided_slice %7 {offsets = [0, 64], sizes = [2, 32], strides = [1, 1]} : vector<2x96xf32> to vector<2x32xf32>
    %29 = vector.extract_strided_slice %11 {offsets = [0, 64], sizes = [2, 32], strides = [1, 1]} : vector<2x96xf32> to vector<2x32xf32>
    %30 = arith.mulf %19, %29 : vector<2x32xf32>
    %31 = arith.addf %28, %30 : vector<2x32xf32>
    %32 = math.tanh %31 : vector<2x32xf32>
    %cst_11 = arith.constant 1.000000e+00 : f32
    %33 = vector.broadcast %cst_11 : f32 to vector<2x32xf32>
    %34 = arith.subf %33, %27 : vector<2x32xf32>
    %35 = arith.mulf %34, %32 : vector<2x32xf32>
    %36 = arith.mulf %27, %5 : vector<2x32xf32>
    %37 = arith.addf %35, %36 : vector<2x32xf32>
    %38 = arith.truncf %37 : vector<2x32xf32> to vector<2x32xbf16>
    %c0_12 = arith.constant 0 : index
    %c0_13 = arith.constant 0 : index
    %c0_14 = arith.constant 0 : index
    %39 = vector.load %arg5[%c0_12, %c0_13, %c0_14] : memref<2x8x32xbf16, #tpu.memory_space<vmem>>, vector<2x1x32xbf16>
    %40 = vector.shape_cast %39 : vector<2x1x32xbf16> to vector<2x32xbf16>
    %41 = vector.shape_cast %38 : vector<2x32xbf16> to vector<2x1x32xbf16>
    tpu.vector_store %arg5[%c0_12, %c0_13, %c0_14], %41 {strides = array<i32>} : memref<2x8x32xbf16, #tpu.memory_space<vmem>>, vector<2x1x32xbf16>,
    %c0_15 = arith.constant 0 : index
    %c1 = arith.constant 1 : index
    %c0_16 = arith.constant 0 : index
    %42 = vector.load %arg1[%c0_15, %c1, %c0_16] : memref<2x8x96xf32, #tpu.memory_space<vmem>>, vector<2x1x96xf32>
    %43 = vector.shape_cast %42 : vector<2x1x96xf32> to vector<2x96xf32>
    %44 = arith.truncf %37 : vector<2x32xf32> to vector<2x32xbf16>
    %cst_17 = arith.constant dense<0.000000e+00> : vector<2x96xf32>
    %45 = tpu.matmul %44, %3, %cst_17 {dimension_numbers = #tpu.dot_dimension_numbers<[1], [0], [0], [1], [0, 0, 1, 1], [], []>} : vector<2x32xbf16>, vector<32x96xbf16>, vector<2x96xf32> -> vector<2x96xf32>
    %46 = vector.broadcast %4 : vector<1x96xf32> to vector<2x96xf32>
    %47 = arith.addf %45, %46 : vector<2x96xf32>
    %48 = vector.extract_strided_slice %43 {offsets = [0, 0], sizes = [2, 32], strides = [1, 1]} : vector<2x96xf32> to vector<2x32xf32>
    %49 = vector.extract_strided_slice %47 {offsets = [0, 0], sizes = [2, 32], strides = [1, 1]} : vector<2x96xf32> to vector<2x32xf32>
    %50 = arith.addf %48, %49 : vector<2x32xf32>
    %51 = arith.negf %50 : vector<2x32xf32>
    %52 = math.exp %51 : vector<2x32xf32>
    %cst_18 = arith.constant 1.000000e+00 : f32
    %53 = vector.broadcast %cst_18 : f32 to vector<2x32xf32>
    %54 = arith.addf %53, %52 : vector<2x32xf32>
    %55 = arith.divf %53, %54 : vector<2x32xf32>
    %56 = vector.extract_strided_slice %43 {offsets = [0, 32], sizes = [2, 32], strides = [1, 1]} : vector<2x96xf32> to vector<2x32xf32>
    %57 = vector.extract_strided_slice %47 {offsets = [0, 32], sizes = [2, 32], strides = [1, 1]} : vector<2x96xf32> to vector<2x32xf32>
    %58 = arith.addf %56, %57 : vector<2x32xf32>
    %59 = arith.negf %58 : vector<2x32xf32>
    %60 = math.exp %59 : vector<2x32xf32>
    %cst_19 = arith.constant 1.000000e+00 : f32
    %61 = vector.broadcast %cst_19 : f32 to vector<2x32xf32>
    %62 = arith.addf %61, %60 : vector<2x32xf32>
    %63 = arith.divf %61, %62 : vector<2x32xf32>
    %64 = vector.extract_strided_slice %43 {offsets = [0, 64], sizes = [2, 32], strides = [1, 1]} : vector<2x96xf32> to vector<2x32xf32>
    %65 = vector.extract_strided_slice %47 {offsets = [0, 64], sizes = [2, 32], strides = [1, 1]} : vector<2x96xf32> to vector<2x32xf32>
    %66 = arith.mulf %55, %65 : vector<2x32xf32>
    %67 = arith.addf %64, %66 : vector<2x32xf32>
    %68 = math.tanh %67 : vector<2x32xf32>
    %cst_20 = arith.constant 1.000000e+00 : f32
    %69 = vector.broadcast %cst_20 : f32 to vector<2x32xf32>
    %70 = arith.subf %69, %63 : vector<2x32xf32>
    %71 = arith.mulf %70, %68 : vector<2x32xf32>
    %72 = arith.mulf %63, %37 : vector<2x32xf32>
    %73 = arith.addf %71, %72 : vector<2x32xf32>
    %74 = arith.truncf %73 : vector<2x32xf32> to vector<2x32xbf16>
    %c0_21 = arith.constant 0 : index
    %c1_22 = arith.constant 1 : index
    %c0_23 = arith.constant 0 : index
    %75 = vector.load %arg5[%c0_21, %c1_22, %c0_23] : memref<2x8x32xbf16, #tpu.memory_space<vmem>>, vector<2x1x32xbf16>
    %76 = vector.shape_cast %75 : vector<2x1x32xbf16> to vector<2x32xbf16>
    %77 = vector.shape_cast %74 : vector<2x32xbf16> to vector<2x1x32xbf16>
    tpu.vector_store %arg5[%c0_21, %c1_22, %c0_23], %77 {strides = array<i32>} : memref<2x8x32xbf16, #tpu.memory_space<vmem>>, vector<2x1x32xbf16>,
    %c0_24 = arith.constant 0 : index
    %c2 = arith.constant 2 : index
    %c0_25 = arith.constant 0 : index
    %78 = vector.load %arg1[%c0_24, %c2, %c0_25] : memref<2x8x96xf32, #tpu.memory_space<vmem>>, vector<2x1x96xf32>
    %79 = vector.shape_cast %78 : vector<2x1x96xf32> to vector<2x96xf32>
    %80 = arith.truncf %73 : vector<2x32xf32> to vector<2x32xbf16>
    %cst_26 = arith.constant dense<0.000000e+00> : vector<2x96xf32>
    %81 = tpu.matmul %80, %3, %cst_26 {dimension_numbers = #tpu.dot_dimension_numbers<[1], [0], [0], [1], [0, 0, 1, 1], [], []>} : vector<2x32xbf16>, vector<32x96xbf16>, vector<2x96xf32> -> vector<2x96xf32>
    %82 = vector.broadcast %4 : vector<1x96xf32> to vector<2x96xf32>
    %83 = arith.addf %81, %82 : vector<2x96xf32>
    %84 = vector.extract_strided_slice %79 {offsets = [0, 0], sizes = [2, 32], strides = [1, 1]} : vector<2x96xf32> to vector<2x32xf32>
    %85 = vector.extract_strided_slice %83 {offsets = [0, 0], sizes = [2, 32], strides = [1, 1]} : vector<2x96xf32> to vector<2x32xf32>
    %86 = arith.addf %84, %85 : vector<2x32xf32>
    %87 = arith.negf %86 : vector<2x32xf32>
    %88 = math.exp %87 : vector<2x32xf32>
    %cst_27 = arith.constant 1.000000e+00 : f32
    %89 = vector.broadcast %cst_27 : f32 to vector<2x32xf32>
    %90 = arith.addf %89, %88 : vector<2x32xf32>
    %91 = arith.divf %89, %90 : vector<2x32xf32>
    %92 = vector.extract_strided_slice %79 {offsets = [0, 32], sizes = [2, 32], strides = [1, 1]} : vector<2x96xf32> to vector<2x32xf32>
    %93 = vector.extract_strided_slice %83 {offsets = [0, 32], sizes = [2, 32], strides = [1, 1]} : vector<2x96xf32> to vector<2x32xf32>
    %94 = arith.addf %92, %93 : vector<2x32xf32>
    %95 = arith.negf %94 : vector<2x32xf32>
    %96 = math.exp %95 : vector<2x32xf32>
    %cst_28 = arith.constant 1.000000e+00 : f32
    %97 = vector.broadcast %cst_28 : f32 to vector<2x32xf32>
    %98 = arith.addf %97, %96 : vector<2x32xf32>
    %99 = arith.divf %97, %98 : vector<2x32xf32>
    %100 = vector.extract_strided_slice %79 {offsets = [0, 64], sizes = [2, 32], strides = [1, 1]} : vector<2x96xf32> to vector<2x32xf32>
    %101 = vector.extract_strided_slice %83 {offsets = [0, 64], sizes = [2, 32], strides = [1, 1]} : vector<2x96xf32> to vector<2x32xf32>
    %102 = arith.mulf %91, %101 : vector<2x32xf32>
    %103 = arith.addf %100, %102 : vector<2x32xf32>
    %104 = math.tanh %103 : vector<2x32xf32>
    %cst_29 = arith.constant 1.000000e+00 : f32
    %105 = vector.broadcast %cst_29 : f32 to vector<2x32xf32>
    %106 = arith.subf %105, %99 : vector<2x32xf32>
    %107 = arith.mulf %106, %104 : vector<2x32xf32>
    %108 = arith.mulf %99, %73 : vector<2x32xf32>
    %109 = arith.addf %107, %108 : vector<2x32xf32>
    %110 = arith.truncf %109 : vector<2x32xf32> to vector<2x32xbf16>
    %c0_30 = arith.constant 0 : index
    %c2_31 = arith.constant 2 : index
    %c0_32 = arith.constant 0 : index
    %111 = vector.load %arg5[%c0_30, %c2_31, %c0_32] : memref<2x8x32xbf16, #tpu.memory_space<vmem>>, vector<2x1x32xbf16>
    %112 = vector.shape_cast %111 : vector<2x1x32xbf16> to vector<2x32xbf16>
    %113 = vector.shape_cast %110 : vector<2x32xbf16> to vector<2x1x32xbf16>
    tpu.vector_store %arg5[%c0_30, %c2_31, %c0_32], %113 {strides = array<i32>} : memref<2x8x32xbf16, #tpu.memory_space<vmem>>, vector<2x1x32xbf16>,
    %c0_33 = arith.constant 0 : index
    %c3 = arith.constant 3 : index
    %c0_34 = arith.constant 0 : index
    %114 = vector.load %arg1[%c0_33, %c3, %c0_34] : memref<2x8x96xf32, #tpu.memory_space<vmem>>, vector<2x1x96xf32>
    %115 = vector.shape_cast %114 : vector<2x1x96xf32> to vector<2x96xf32>
    %116 = arith.truncf %109 : vector<2x32xf32> to vector<2x32xbf16>
    %cst_35 = arith.constant dense<0.000000e+00> : vector<2x96xf32>
    %117 = tpu.matmul %116, %3, %cst_35 {dimension_numbers = #tpu.dot_dimension_numbers<[1], [0], [0], [1], [0, 0, 1, 1], [], []>} : vector<2x32xbf16>, vector<32x96xbf16>, vector<2x96xf32> -> vector<2x96xf32>
    %118 = vector.broadcast %4 : vector<1x96xf32> to vector<2x96xf32>
    %119 = arith.addf %117, %118 : vector<2x96xf32>
    %120 = vector.extract_strided_slice %115 {offsets = [0, 0], sizes = [2, 32], strides = [1, 1]} : vector<2x96xf32> to vector<2x32xf32>
    %121 = vector.extract_strided_slice %119 {offsets = [0, 0], sizes = [2, 32], strides = [1, 1]} : vector<2x96xf32> to vector<2x32xf32>
    %122 = arith.addf %120, %121 : vector<2x32xf32>
    %123 = arith.negf %122 : vector<2x32xf32>
    %124 = math.exp %123 : vector<2x32xf32>
    %cst_36 = arith.constant 1.000000e+00 : f32
    %125 = vector.broadcast %cst_36 : f32 to vector<2x32xf32>
    %126 = arith.addf %125, %124 : vector<2x32xf32>
    %127 = arith.divf %125, %126 : vector<2x32xf32>
    %128 = vector.extract_strided_slice %115 {offsets = [0, 32], sizes = [2, 32], strides = [1, 1]} : vector<2x96xf32> to vector<2x32xf32>
    %129 = vector.extract_strided_slice %119 {offsets = [0, 32], sizes = [2, 32], strides = [1, 1]} : vector<2x96xf32> to vector<2x32xf32>
    %130 = arith.addf %128, %129 : vector<2x32xf32>
    %131 = arith.negf %130 : vector<2x32xf32>
    %132 = math.exp %131 : vector<2x32xf32>
    %cst_37 = arith.constant 1.000000e+00 : f32
    %133 = vector.broadcast %cst_37 : f32 to vector<2x32xf32>
    %134 = arith.addf %133, %132 : vector<2x32xf32>
    %135 = arith.divf %133, %134 : vector<2x32xf32>
    %136 = vector.extract_strided_slice %115 {offsets = [0, 64], sizes = [2, 32], strides = [1, 1]} : vector<2x96xf32> to vector<2x32xf32>
    %137 = vector.extract_strided_slice %119 {offsets = [0, 64], sizes = [2, 32], strides = [1, 1]} : vector<2x96xf32> to vector<2x32xf32>
    %138 = arith.mulf %127, %137 : vector<2x32xf32>
    %139 = arith.addf %136, %138 : vector<2x32xf32>
    %140 = math.tanh %139 : vector<2x32xf32>
    %cst_38 = arith.constant 1.000000e+00 : f32
    %141 = vector.broadcast %cst_38 : f32 to vector<2x32xf32>
    %142 = arith.subf %141, %135 : vector<2x32xf32>
    %143 = arith.mulf %142, %140 : vector<2x32xf32>
    %144 = arith.mulf %135, %109 : vector<2x32xf32>
    %145 = arith.addf %143, %144 : vector<2x32xf32>
    %146 = arith.truncf %145 : vector<2x32xf32> to vector<2x32xbf16>
    %c0_39 = arith.constant 0 : index
    %c3_40 = arith.constant 3 : index
    %c0_41 = arith.constant 0 : index
    %147 = vector.load %arg5[%c0_39, %c3_40, %c0_41] : memref<2x8x32xbf16, #tpu.memory_space<vmem>>, vector<2x1x32xbf16>
    %148 = vector.shape_cast %147 : vector<2x1x32xbf16> to vector<2x32xbf16>
    %149 = vector.shape_cast %146 : vector<2x32xbf16> to vector<2x1x32xbf16>
    tpu.vector_store %arg5[%c0_39, %c3_40, %c0_41], %149 {strides = array<i32>} : memref<2x8x32xbf16, #tpu.memory_space<vmem>>, vector<2x1x32xbf16>,
    %c0_42 = arith.constant 0 : index
    %c4 = arith.constant 4 : index
    %c0_43 = arith.constant 0 : index
    %150 = vector.load %arg1[%c0_42, %c4, %c0_43] : memref<2x8x96xf32, #tpu.memory_space<vmem>>, vector<2x1x96xf32>
    %151 = vector.shape_cast %150 : vector<2x1x96xf32> to vector<2x96xf32>
    %152 = arith.truncf %145 : vector<2x32xf32> to vector<2x32xbf16>
    %cst_44 = arith.constant dense<0.000000e+00> : vector<2x96xf32>
    %153 = tpu.matmul %152, %3, %cst_44 {dimension_numbers = #tpu.dot_dimension_numbers<[1], [0], [0], [1], [0, 0, 1, 1], [], []>} : vector<2x32xbf16>, vector<32x96xbf16>, vector<2x96xf32> -> vector<2x96xf32>
    %154 = vector.broadcast %4 : vector<1x96xf32> to vector<2x96xf32>
    %155 = arith.addf %153, %154 : vector<2x96xf32>
    %156 = vector.extract_strided_slice %151 {offsets = [0, 0], sizes = [2, 32], strides = [1, 1]} : vector<2x96xf32> to vector<2x32xf32>
    %157 = vector.extract_strided_slice %155 {offsets = [0, 0], sizes = [2, 32], strides = [1, 1]} : vector<2x96xf32> to vector<2x32xf32>
    %158 = arith.addf %156, %157 : vector<2x32xf32>
    %159 = arith.negf %158 : vector<2x32xf32>
    %160 = math.exp %159 : vector<2x32xf32>
    %cst_45 = arith.constant 1.000000e+00 : f32
    %161 = vector.broadcast %cst_45 : f32 to vector<2x32xf32>
    %162 = arith.addf %161, %160 : vector<2x32xf32>
    %163 = arith.divf %161, %162 : vector<2x32xf32>
    %164 = vector.extract_strided_slice %151 {offsets = [0, 32], sizes = [2, 32], strides = [1, 1]} : vector<2x96xf32> to vector<2x32xf32>
    %165 = vector.extract_strided_slice %155 {offsets = [0, 32], sizes = [2, 32], strides = [1, 1]} : vector<2x96xf32> to vector<2x32xf32>
    %166 = arith.addf %164, %165 : vector<2x32xf32>
    %167 = arith.negf %166 : vector<2x32xf32>
    %168 = math.exp %167 : vector<2x32xf32>
    %cst_46 = arith.constant 1.000000e+00 : f32
    %169 = vector.broadcast %cst_46 : f32 to vector<2x32xf32>
    %170 = arith.addf %169, %168 : vector<2x32xf32>
    %171 = arith.divf %169, %170 : vector<2x32xf32>
    %172 = vector.extract_strided_slice %151 {offsets = [0, 64], sizes = [2, 32], strides = [1, 1]} : vector<2x96xf32> to vector<2x32xf32>
    %173 = vector.extract_strided_slice %155 {offsets = [0, 64], sizes = [2, 32], strides = [1, 1]} : vector<2x96xf32> to vector<2x32xf32>
    %174 = arith.mulf %163, %173 : vector<2x32xf32>
    %175 = arith.addf %172, %174 : vector<2x32xf32>
    %176 = math.tanh %175 : vector<2x32xf32>
    %cst_47 = arith.constant 1.000000e+00 : f32
    %177 = vector.broadcast %cst_47 : f32 to vector<2x32xf32>
    %178 = arith.subf %177, %171 : vector<2x32xf32>
    %179 = arith.mulf %178, %176 : vector<2x32xf32>
    %180 = arith.mulf %171, %145 : vector<2x32xf32>
    %181 = arith.addf %179, %180 : vector<2x32xf32>
    %182 = arith.truncf %181 : vector<2x32xf32> to vector<2x32xbf16>
    %c0_48 = arith.constant 0 : index
    %c4_49 = arith.constant 4 : index
    %c0_50 = arith.constant 0 : index
    %183 = vector.load %arg5[%c0_48, %c4_49, %c0_50] : memref<2x8x32xbf16, #tpu.memory_space<vmem>>, vector<2x1x32xbf16>
    %184 = vector.shape_cast %183 : vector<2x1x32xbf16> to vector<2x32xbf16>
    %185 = vector.shape_cast %182 : vector<2x32xbf16> to vector<2x1x32xbf16>
    tpu.vector_store %arg5[%c0_48, %c4_49, %c0_50], %185 {strides = array<i32>} : memref<2x8x32xbf16, #tpu.memory_space<vmem>>, vector<2x1x32xbf16>,
    %c0_51 = arith.constant 0 : index
    %c5 = arith.constant 5 : index
    %c0_52 = arith.constant 0 : index
    %186 = vector.load %arg1[%c0_51, %c5, %c0_52] : memref<2x8x96xf32, #tpu.memory_space<vmem>>, vector<2x1x96xf32>
    %187 = vector.shape_cast %186 : vector<2x1x96xf32> to vector<2x96xf32>
    %188 = arith.truncf %181 : vector<2x32xf32> to vector<2x32xbf16>
    %cst_53 = arith.constant dense<0.000000e+00> : vector<2x96xf32>
    %189 = tpu.matmul %188, %3, %cst_53 {dimension_numbers = #tpu.dot_dimension_numbers<[1], [0], [0], [1], [0, 0, 1, 1], [], []>} : vector<2x32xbf16>, vector<32x96xbf16>, vector<2x96xf32> -> vector<2x96xf32>
    %190 = vector.broadcast %4 : vector<1x96xf32> to vector<2x96xf32>
    %191 = arith.addf %189, %190 : vector<2x96xf32>
    %192 = vector.extract_strided_slice %187 {offsets = [0, 0], sizes = [2, 32], strides = [1, 1]} : vector<2x96xf32> to vector<2x32xf32>
    %193 = vector.extract_strided_slice %191 {offsets = [0, 0], sizes = [2, 32], strides = [1, 1]} : vector<2x96xf32> to vector<2x32xf32>
    %194 = arith.addf %192, %193 : vector<2x32xf32>
    %195 = arith.negf %194 : vector<2x32xf32>
    %196 = math.exp %195 : vector<2x32xf32>
    %cst_54 = arith.constant 1.000000e+00 : f32
    %197 = vector.broadcast %cst_54 : f32 to vector<2x32xf32>
    %198 = arith.addf %197, %196 : vector<2x32xf32>
    %199 = arith.divf %197, %198 : vector<2x32xf32>
    %200 = vector.extract_strided_slice %187 {offsets = [0, 32], sizes = [2, 32], strides = [1, 1]} : vector<2x96xf32> to vector<2x32xf32>
    %201 = vector.extract_strided_slice %191 {offsets = [0, 32], sizes = [2, 32], strides = [1, 1]} : vector<2x96xf32> to vector<2x32xf32>
    %202 = arith.addf %200, %201 : vector<2x32xf32>
    %203 = arith.negf %202 : vector<2x32xf32>
    %204 = math.exp %203 : vector<2x32xf32>
    %cst_55 = arith.constant 1.000000e+00 : f32
    %205 = vector.broadcast %cst_55 : f32 to vector<2x32xf32>
    %206 = arith.addf %205, %204 : vector<2x32xf32>
    %207 = arith.divf %205, %206 : vector<2x32xf32>
    %208 = vector.extract_strided_slice %187 {offsets = [0, 64], sizes = [2, 32], strides = [1, 1]} : vector<2x96xf32> to vector<2x32xf32>
    %209 = vector.extract_strided_slice %191 {offsets = [0, 64], sizes = [2, 32], strides = [1, 1]} : vector<2x96xf32> to vector<2x32xf32>
    %210 = arith.mulf %199, %209 : vector<2x32xf32>
    %211 = arith.addf %208, %210 : vector<2x32xf32>
    %212 = math.tanh %211 : vector<2x32xf32>
    %cst_56 = arith.constant 1.000000e+00 : f32
    %213 = vector.broadcast %cst_56 : f32 to vector<2x32xf32>
    %214 = arith.subf %213, %207 : vector<2x32xf32>
    %215 = arith.mulf %214, %212 : vector<2x32xf32>
    %216 = arith.mulf %207, %181 : vector<2x32xf32>
    %217 = arith.addf %215, %216 : vector<2x32xf32>
    %218 = arith.truncf %217 : vector<2x32xf32> to vector<2x32xbf16>
    %c0_57 = arith.constant 0 : index
    %c5_58 = arith.constant 5 : index
    %c0_59 = arith.constant 0 : index
    %219 = vector.load %arg5[%c0_57, %c5_58, %c0_59] : memref<2x8x32xbf16, #tpu.memory_space<vmem>>, vector<2x1x32xbf16>
    %220 = vector.shape_cast %219 : vector<2x1x32xbf16> to vector<2x32xbf16>
    %221 = vector.shape_cast %218 : vector<2x32xbf16> to vector<2x1x32xbf16>
    tpu.vector_store %arg5[%c0_57, %c5_58, %c0_59], %221 {strides = array<i32>} : memref<2x8x32xbf16, #tpu.memory_space<vmem>>, vector<2x1x32xbf16>,
    %c0_60 = arith.constant 0 : index
    %c6 = arith.constant 6 : index
    %c0_61 = arith.constant 0 : index
    %222 = vector.load %arg1[%c0_60, %c6, %c0_61] : memref<2x8x96xf32, #tpu.memory_space<vmem>>, vector<2x1x96xf32>
    %223 = vector.shape_cast %222 : vector<2x1x96xf32> to vector<2x96xf32>
    %224 = arith.truncf %217 : vector<2x32xf32> to vector<2x32xbf16>
    %cst_62 = arith.constant dense<0.000000e+00> : vector<2x96xf32>
    %225 = tpu.matmul %224, %3, %cst_62 {dimension_numbers = #tpu.dot_dimension_numbers<[1], [0], [0], [1], [0, 0, 1, 1], [], []>} : vector<2x32xbf16>, vector<32x96xbf16>, vector<2x96xf32> -> vector<2x96xf32>
    %226 = vector.broadcast %4 : vector<1x96xf32> to vector<2x96xf32>
    %227 = arith.addf %225, %226 : vector<2x96xf32>
    %228 = vector.extract_strided_slice %223 {offsets = [0, 0], sizes = [2, 32], strides = [1, 1]} : vector<2x96xf32> to vector<2x32xf32>
    %229 = vector.extract_strided_slice %227 {offsets = [0, 0], sizes = [2, 32], strides = [1, 1]} : vector<2x96xf32> to vector<2x32xf32>
    %230 = arith.addf %228, %229 : vector<2x32xf32>
    %231 = arith.negf %230 : vector<2x32xf32>
    %232 = math.exp %231 : vector<2x32xf32>
    %cst_63 = arith.constant 1.000000e+00 : f32
    %233 = vector.broadcast %cst_63 : f32 to vector<2x32xf32>
    %234 = arith.addf %233, %232 : vector<2x32xf32>
    %235 = arith.divf %233, %234 : vector<2x32xf32>
    %236 = vector.extract_strided_slice %223 {offsets = [0, 32], sizes = [2, 32], strides = [1, 1]} : vector<2x96xf32> to vector<2x32xf32>
    %237 = vector.extract_strided_slice %227 {offsets = [0, 32], sizes = [2, 32], strides = [1, 1]} : vector<2x96xf32> to vector<2x32xf32>
    %238 = arith.addf %236, %237 : vector<2x32xf32>
    %239 = arith.negf %238 : vector<2x32xf32>
    %240 = math.exp %239 : vector<2x32xf32>
    %cst_64 = arith.constant 1.000000e+00 : f32
    %241 = vector.broadcast %cst_64 : f32 to vector<2x32xf32>
    %242 = arith.addf %241, %240 : vector<2x32xf32>
    %243 = arith.divf %241, %242 : vector<2x32xf32>
    %244 = vector.extract_strided_slice %223 {offsets = [0, 64], sizes = [2, 32], strides = [1, 1]} : vector<2x96xf32> to vector<2x32xf32>
    %245 = vector.extract_strided_slice %227 {offsets = [0, 64], sizes = [2, 32], strides = [1, 1]} : vector<2x96xf32> to vector<2x32xf32>
    %246 = arith.mulf %235, %245 : vector<2x32xf32>
    %247 = arith.addf %244, %246 : vector<2x32xf32>
    %248 = math.tanh %247 : vector<2x32xf32>
    %cst_65 = arith.constant 1.000000e+00 : f32
    %249 = vector.broadcast %cst_65 : f32 to vector<2x32xf32>
    %250 = arith.subf %249, %243 : vector<2x32xf32>
    %251 = arith.mulf %250, %248 : vector<2x32xf32>
    %252 = arith.mulf %243, %217 : vector<2x32xf32>
    %253 = arith.addf %251, %252 : vector<2x32xf32>
    %254 = arith.truncf %253 : vector<2x32xf32> to vector<2x32xbf16>
    %c0_66 = arith.constant 0 : index
    %c6_67 = arith.constant 6 : index
    %c0_68 = arith.constant 0 : index
    %255 = vector.load %arg5[%c0_66, %c6_67, %c0_68] : memref<2x8x32xbf16, #tpu.memory_space<vmem>>, vector<2x1x32xbf16>
    %256 = vector.shape_cast %255 : vector<2x1x32xbf16> to vector<2x32xbf16>
    %257 = vector.shape_cast %254 : vector<2x32xbf16> to vector<2x1x32xbf16>
    tpu.vector_store %arg5[%c0_66, %c6_67, %c0_68], %257 {strides = array<i32>} : memref<2x8x32xbf16, #tpu.memory_space<vmem>>, vector<2x1x32xbf16>,
    %c0_69 = arith.constant 0 : index
    %c7 = arith.constant 7 : index
    %c0_70 = arith.constant 0 : index
    %258 = vector.load %arg1[%c0_69, %c7, %c0_70] : memref<2x8x96xf32, #tpu.memory_space<vmem>>, vector<2x1x96xf32>
    %259 = vector.shape_cast %258 : vector<2x1x96xf32> to vector<2x96xf32>
    %260 = arith.truncf %253 : vector<2x32xf32> to vector<2x32xbf16>
    %cst_71 = arith.constant dense<0.000000e+00> : vector<2x96xf32>
    %261 = tpu.matmul %260, %3, %cst_71 {dimension_numbers = #tpu.dot_dimension_numbers<[1], [0], [0], [1], [0, 0, 1, 1], [], []>} : vector<2x32xbf16>, vector<32x96xbf16>, vector<2x96xf32> -> vector<2x96xf32>
    %262 = vector.broadcast %4 : vector<1x96xf32> to vector<2x96xf32>
    %263 = arith.addf %261, %262 : vector<2x96xf32>
    %264 = vector.extract_strided_slice %259 {offsets = [0, 0], sizes = [2, 32], strides = [1, 1]} : vector<2x96xf32> to vector<2x32xf32>
    %265 = vector.extract_strided_slice %263 {offsets = [0, 0], sizes = [2, 32], strides = [1, 1]} : vector<2x96xf32> to vector<2x32xf32>
    %266 = arith.addf %264, %265 : vector<2x32xf32>
    %267 = arith.negf %266 : vector<2x32xf32>
    %268 = math.exp %267 : vector<2x32xf32>
    %cst_72 = arith.constant 1.000000e+00 : f32
    %269 = vector.broadcast %cst_72 : f32 to vector<2x32xf32>
    %270 = arith.addf %269, %268 : vector<2x32xf32>
    %271 = arith.divf %269, %270 : vector<2x32xf32>
    %272 = vector.extract_strided_slice %259 {offsets = [0, 32], sizes = [2, 32], strides = [1, 1]} : vector<2x96xf32> to vector<2x32xf32>
    %273 = vector.extract_strided_slice %263 {offsets = [0, 32], sizes = [2, 32], strides = [1, 1]} : vector<2x96xf32> to vector<2x32xf32>
    %274 = arith.addf %272, %273 : vector<2x32xf32>
    %275 = arith.negf %274 : vector<2x32xf32>
    %276 = math.exp %275 : vector<2x32xf32>
    %cst_73 = arith.constant 1.000000e+00 : f32
    %277 = vector.broadcast %cst_73 : f32 to vector<2x32xf32>
    %278 = arith.addf %277, %276 : vector<2x32xf32>
    %279 = arith.divf %277, %278 : vector<2x32xf32>
    %280 = vector.extract_strided_slice %259 {offsets = [0, 64], sizes = [2, 32], strides = [1, 1]} : vector<2x96xf32> to vector<2x32xf32>
    %281 = vector.extract_strided_slice %263 {offsets = [0, 64], sizes = [2, 32], strides = [1, 1]} : vector<2x96xf32> to vector<2x32xf32>
    %282 = arith.mulf %271, %281 : vector<2x32xf32>
    %283 = arith.addf %280, %282 : vector<2x32xf32>
    %284 = math.tanh %283 : vector<2x32xf32>
    %cst_74 = arith.constant 1.000000e+00 : f32
    %285 = vector.broadcast %cst_74 : f32 to vector<2x32xf32>
    %286 = arith.subf %285, %279 : vector<2x32xf32>
    %287 = arith.mulf %286, %284 : vector<2x32xf32>
    %288 = arith.mulf %279, %253 : vector<2x32xf32>
    %289 = arith.addf %287, %288 : vector<2x32xf32>
    %290 = arith.truncf %289 : vector<2x32xf32> to vector<2x32xbf16>
    %c0_75 = arith.constant 0 : index
    %c7_76 = arith.constant 7 : index
    %c0_77 = arith.constant 0 : index
    %291 = vector.load %arg5[%c0_75, %c7_76, %c0_77] : memref<2x8x32xbf16, #tpu.memory_space<vmem>>, vector<2x1x32xbf16>
    %292 = vector.shape_cast %291 : vector<2x1x32xbf16> to vector<2x32xbf16>
    %293 = vector.shape_cast %290 : vector<2x32xbf16> to vector<2x1x32xbf16>
    tpu.vector_store %arg5[%c0_75, %c7_76, %c0_77], %293 {strides = array<i32>} : memref<2x8x32xbf16, #tpu.memory_space<vmem>>, vector<2x1x32xbf16>,
    %c0_78 = arith.constant 0 : index
    %c0_79 = arith.constant 0 : index
    %294 = vector.load %arg7[%c0_78, %c0_79] : memref<2x32xf32, #tpu.memory_space<vmem>>, vector<2x32xf32>
    tpu.vector_store %arg7[%c0_78, %c0_79], %289 {strides = array<i32>} : memref<2x32xf32, #tpu.memory_space<vmem>>, vector<2x32xf32>,
    %c0_i32_80 = arith.constant 0 : i32
    %295 = arith.cmpi eq, %arg0, %c0_i32_80 : i32
    %296 = arith.extui %295 : i1 to i32
    %c0_i32_81 = arith.constant 0 : i32
    %297 = arith.cmpi ne, %296, %c0_i32_81 : i32
    scf.if %297 {
      %c0_82 = arith.constant 0 : index
      %c0_83 = arith.constant 0 : index
      %298 = vector.load %arg6[%c0_82, %c0_83] : memref<2x32xf32, #tpu.memory_space<vmem>>, vector<2x32xf32>
      tpu.vector_store %arg6[%c0_82, %c0_83], %289 {strides = array<i32>} : memref<2x32xf32, #tpu.memory_space<vmem>>, vector<2x32xf32>,
    } else {
    }
    return
  }
  func.func @transform_0(%arg0: i32) -> (i32, i32, i32) {
    %c0_i32 = arith.constant 0 : i32
    %c0_i32_0 = arith.constant 0 : i32
    %c0_i32_1 = arith.constant 0 : i32
    return %c0_i32, %arg0, %c0_i32_0 : i32, i32, i32
  }
  func.func @transform_1(%arg0: i32) -> (i32, i32) {
    %c0_i32 = arith.constant 0 : i32
    %c0_i32_0 = arith.constant 0 : i32
    %c0_i32_1 = arith.constant 0 : i32
    return %c0_i32, %c0_i32_0 : i32, i32
  }
  func.func @transform_2(%arg0: i32) -> (i32, i32) {
    %c0_i32 = arith.constant 0 : i32
    %c0_i32_0 = arith.constant 0 : i32
    %c0_i32_1 = arith.constant 0 : i32
    return %c0_i32, %c0_i32_0 : i32, i32
  }
  func.func @transform_3(%arg0: i32) -> (i32, i32) {
    %c0_i32 = arith.constant 0 : i32
    %c0_i32_0 = arith.constant 0 : i32
    %c0_i32_1 = arith.constant 0 : i32
    return %c0_i32, %c0_i32_0 : i32, i32
  }
  func.func @transform_4(%arg0: i32) -> (i32, i32, i32) {
    %c0_i32 = arith.constant 0 : i32
    %c0_i32_0 = arith.constant 0 : i32
    %c0_i32_1 = arith.constant 0 : i32
    return %c0_i32, %arg0, %c0_i32_0 : i32, i32, i32
  }
  func.func @transform_5(%arg0: i32) -> (i32, i32) {
    %c0_i32 = arith.constant 0 : i32
    %c0_i32_0 = arith.constant 0 : i32
    %c0_i32_1 = arith.constant 0 : i32
    return %c0_i32, %c0_i32_0 : i32, i32
  }
}

module attributes {stable_mosaic.version = 11 : i64} {
  func.func @_dense_softmax_kernel(%arg0: i32, %arg1: memref<16x32xbf16, #tpu.memory_space<vmem>>, %arg2: memref<32x16xbf16, #tpu.memory_space<vmem>>, %arg3: memref<1x16xf32, #tpu.memory_space<vmem>>, %arg4: memref<16x16xf32, #tpu.memory_space<vmem>>) attributes {dimension_semantics = [#tpu.dimension_semantics<parallel>], iteration_bounds = array<i64: 1>, scalar_prefetch = 0 : i64, scratch_operands = 0 : i64, tpu.core_type = #tpu.core_type<tc>, window_params = [{transform_indices = @transform_0, window_bounds = array<i64: 16, 32>}, {pipeline_mode = #tpu.pipeline_mode<synchronous>, transform_indices = @transform_1, window_bounds = array<i64: 32, 16>}, {pipeline_mode = #tpu.pipeline_mode<synchronous>, transform_indices = @transform_2, window_bounds = array<i64: 1, 16>}, {transform_indices = @transform_3, window_bounds = array<i64: 16, 16>}]} {
    %c0 = arith.constant 0 : index
    %c0_0 = arith.constant 0 : index
    %0 = vector.load %arg1[%c0, %c0_0] : memref<16x32xbf16, #tpu.memory_space<vmem>>, vector<16x32xbf16>
    %c0_1 = arith.constant 0 : index
    %c0_2 = arith.constant 0 : index
    %1 = vector.load %arg2[%c0_1, %c0_2] : memref<32x16xbf16, #tpu.memory_space<vmem>>, vector<32x16xbf16>
    %cst = arith.constant dense<0.000000e+00> : vector<16x16xf32>
    %2 = tpu.matmul %0, %1, %cst {dimension_numbers = #tpu.dot_dimension_numbers<[1], [0], [0], [1], [0, 0, 1, 1], [], []>} : vector<16x32xbf16>, vector<32x16xbf16>, vector<16x16xf32> -> vector<16x16xf32>
    %c0_3 = arith.constant 0 : index
    %c0_4 = arith.constant 0 : index
    %3 = vector.load %arg3[%c0_3, %c0_4] : memref<1x16xf32, #tpu.memory_space<vmem>>, vector<1x16xf32>
    %4 = vector.broadcast %3 : vector<1x16xf32> to vector<16x16xf32>
    %5 = arith.addf %2, %4 : vector<16x16xf32>
    %cst_5 = arith.constant dense<0xFF800000> : vector<16xf32>
    %6 = vector.multi_reduction <maximumf>, %5, %cst_5 [1] : vector<16x16xf32> to vector<16xf32>
    %7 = vector.shape_cast %6 : vector<16xf32> to vector<16x1xf32>
    %8 = vector.broadcast %7 : vector<16x1xf32> to vector<16x16xf32>
    %9 = arith.subf %5, %8 : vector<16x16xf32>
    %10 = math.exp %9 : vector<16x16xf32>
    %cst_6 = arith.constant dense<0.000000e+00> : vector<16xf32>
    %11 = vector.multi_reduction <add>, %10, %cst_6 [1] : vector<16x16xf32> to vector<16xf32>
    %12 = vector.shape_cast %11 : vector<16xf32> to vector<16x1xf32>
    %13 = vector.broadcast %12 : vector<16x1xf32> to vector<16x16xf32>
    %14 = arith.divf %10, %13 : vector<16x16xf32>
    %c0_7 = arith.constant 0 : index
    %c0_8 = arith.constant 0 : index
    %15 = vector.load %arg4[%c0_7, %c0_8] : memref<16x16xf32, #tpu.memory_space<vmem>>, vector<16x16xf32>
    tpu.vector_store %arg4[%c0_7, %c0_8], %14 {strides = array<i32>} : memref<16x16xf32, #tpu.memory_space<vmem>>, vector<16x16xf32>,
    return
  }
  func.func @transform_0(%arg0: i32) -> (i32, i32) {
    %c0_i32 = arith.constant 0 : i32
    %c0_i32_0 = arith.constant 0 : i32
    return %arg0, %c0_i32 : i32, i32
  }
  func.func @transform_1(%arg0: i32) -> (i32, i32) {
    %c0_i32 = arith.constant 0 : i32
    %c0_i32_0 = arith.constant 0 : i32
    %c0_i32_1 = arith.constant 0 : i32
    return %c0_i32, %c0_i32_0 : i32, i32
  }
  func.func @transform_2(%arg0: i32) -> (i32, i32) {
    %c0_i32 = arith.constant 0 : i32
    %c0_i32_0 = arith.constant 0 : i32
    %c0_i32_1 = arith.constant 0 : i32
    return %c0_i32, %c0_i32_0 : i32, i32
  }
  func.func @transform_3(%arg0: i32) -> (i32, i32) {
    %c0_i32 = arith.constant 0 : i32
    %c0_i32_0 = arith.constant 0 : i32
    return %arg0, %c0_i32 : i32, i32
  }
}

module attributes {stable_mosaic.version = 11 : i64} {
  func.func @_dense_kernel(%arg0: i32, %arg1: i32, %arg2: memref<16x32xbf16, #tpu.memory_space<vmem>>, %arg3: memref<32x96xbf16, #tpu.memory_space<vmem>>, %arg4: memref<1x96xf32, #tpu.memory_space<vmem>>, %arg5: memref<16x96xf32, #tpu.memory_space<vmem>>, %arg6: memref<16x96xf32, #tpu.memory_space<vmem>>) attributes {dimension_semantics = [#tpu.dimension_semantics<parallel>, #tpu.dimension_semantics<arbitrary>], iteration_bounds = array<i64: 1, 1>, scalar_prefetch = 0 : i64, scratch_operands = 1 : i64, tpu.core_type = #tpu.core_type<tc>, window_params = [{transform_indices = @transform_0, window_bounds = array<i64: 16, 32>}, {transform_indices = @transform_1, window_bounds = array<i64: 32, 96>}, {pipeline_mode = #tpu.pipeline_mode<synchronous>, transform_indices = @transform_2, window_bounds = array<i64: 1, 96>}, {transform_indices = @transform_3, window_bounds = array<i64: 16, 96>}]} {
    %c0_i32 = arith.constant 0 : i32
    %0 = arith.cmpi eq, %arg1, %c0_i32 : i32
    %1 = arith.extui %0 : i1 to i32
    %c0_i32_0 = arith.constant 0 : i32
    %2 = arith.cmpi ne, %1, %c0_i32_0 : i32
    scf.if %2 {
      %cst_10 = arith.constant 0.000000e+00 : f32
      %12 = vector.broadcast %cst_10 : f32 to vector<16x96xf32>
      %c0_11 = arith.constant 0 : index
      %c0_12 = arith.constant 0 : index
      %13 = vector.load %arg6[%c0_11, %c0_12] : memref<16x96xf32, #tpu.memory_space<vmem>>, vector<16x96xf32>
      tpu.vector_store %arg6[%c0_11, %c0_12], %12 {strides = array<i32>} : memref<16x96xf32, #tpu.memory_space<vmem>>, vector<16x96xf32>,
    } else {
    }
    %c0 = arith.constant 0 : index
    %c0_1 = arith.constant 0 : index
    %3 = vector.load %arg6[%c0, %c0_1] : memref<16x96xf32, #tpu.memory_space<vmem>>, vector<16x96xf32>
    %c0_2 = arith.constant 0 : index
    %c0_3 = arith.constant 0 : index
    %4 = vector.load %arg2[%c0_2, %c0_3] : memref<16x32xbf16, #tpu.memory_space<vmem>>, vector<16x32xbf16>
    %c0_4 = arith.constant 0 : index
    %c0_5 = arith.constant 0 : index
    %5 = vector.load %arg3[%c0_4, %c0_5] : memref<32x96xbf16, #tpu.memory_space<vmem>>, vector<32x96xbf16>
    %cst = arith.constant dense<0.000000e+00> : vector<16x96xf32>
    %6 = tpu.matmul %4, %5, %cst {dimension_numbers = #tpu.dot_dimension_numbers<[1], [0], [0], [1], [0, 0, 1, 1], [], []>} : vector<16x32xbf16>, vector<32x96xbf16>, vector<16x96xf32> -> vector<16x96xf32>
    %7 = arith.addf %3, %6 : vector<16x96xf32>
    %c0_6 = arith.constant 0 : index
    %c0_7 = arith.constant 0 : index
    %8 = vector.load %arg6[%c0_6, %c0_7] : memref<16x96xf32, #tpu.memory_space<vmem>>, vector<16x96xf32>
    tpu.vector_store %arg6[%c0_6, %c0_7], %7 {strides = array<i32>} : memref<16x96xf32, #tpu.memory_space<vmem>>, vector<16x96xf32>,
    %c0_i32_8 = arith.constant 0 : i32
    %9 = arith.cmpi eq, %arg1, %c0_i32_8 : i32
    %10 = arith.extui %9 : i1 to i32
    %c0_i32_9 = arith.constant 0 : i32
    %11 = arith.cmpi ne, %10, %c0_i32_9 : i32
    scf.if %11 {
      %c0_10 = arith.constant 0 : index
      %c0_11 = arith.constant 0 : index
      %12 = vector.load %arg6[%c0_10, %c0_11] : memref<16x96xf32, #tpu.memory_space<vmem>>, vector<16x96xf32>
      %c0_12 = arith.constant 0 : index
      %c0_13 = arith.constant 0 : index
      %13 = vector.load %arg4[%c0_12, %c0_13] : memref<1x96xf32, #tpu.memory_space<vmem>>, vector<1x96xf32>
      %14 = vector.broadcast %13 : vector<1x96xf32> to vector<16x96xf32>
      %15 = arith.addf %12, %14 : vector<16x96xf32>
      %c0_14 = arith.constant 0 : index
      %c0_15 = arith.constant 0 : index
      %16 = vector.load %arg5[%c0_14, %c0_15] : memref<16x96xf32, #tpu.memory_space<vmem>>, vector<16x96xf32>
      tpu.vector_store %arg5[%c0_14, %c0_15], %15 {strides = array<i32>} : memref<16x96xf32, #tpu.memory_space<vmem>>, vector<16x96xf32>,
    } else {
    }
    return
  }
  func.func @transform_0(%arg0: i32, %arg1: i32) -> (i32, i32) {
    %c0_i32 = arith.constant 0 : i32
    return %arg0, %arg1 : i32, i32
  }
  func.func @transform_1(%arg0: i32, %arg1: i32) -> (i32, i32) {
    %c0_i32 = arith.constant 0 : i32
    %c0_i32_0 = arith.constant 0 : i32
    return %arg1, %c0_i32 : i32, i32
  }
  func.func @transform_2(%arg0: i32, %arg1: i32) -> (i32, i32) {
    %c0_i32 = arith.constant 0 : i32
    %c0_i32_0 = arith.constant 0 : i32
    %c0_i32_1 = arith.constant 0 : i32
    return %c0_i32, %c0_i32_0 : i32, i32
  }
  func.func @transform_3(%arg0: i32, %arg1: i32) -> (i32, i32) {
    %c0_i32 = arith.constant 0 : i32
    %c0_i32_0 = arith.constant 0 : i32
    return %arg0, %c0_i32 : i32, i32
  }
}

</mosaic_0001>

<llo_original>
// kernel: decoder_forward.6
$region0: #{decoder_forward.6}
  #allocation0 [shape = 'u32[]', space=smem, size = 0x4, offset = 0x4, fixed_abs, tag = 'smem constant byte address 0x4 - core index']
  #allocation1 [shape = 'u32[144,128]{1,0:T(1,128)}', space=vmem, size = 0x12000, scoped, tag = 'internal scratch']
  #allocation2 [shape = 'f32[16,32]{1,0:T(8,128)}', space=vmem, size = 0x2000, scoped, tag = 'scratch operand']
  %s0 = inlined_call_operand.vmem [shape: f32[16,16], index: 0, kind: input, shape index: {}]
  %s1 = inlined_call_operand.hbm [shape: bf16[16,32], index: 1, kind: input, shape index: {}]
  %s2 = inlined_call_operand.vmem [shape: f32[1,32], index: 2, kind: input, shape index: {}]
  %s3 = inlined_call_operand.vmem [shape: bf16[16,32], index: 3, kind: output, shape index: {}]
  %s4 = sld [smem:[#allocation0]]
  $region34: #{decoder_forward.6} parent=0
    _
  %s6 = ssub.s32 1, %s4
  %s7 = scalar_select 0, %s6, %s4
  $region1: #{decoder_forward.6} parent=0
    #allocation3 [shape = 'u8[4096]{0}', space=vmem, size = 0x1000, scoped, tag = 'input window, operand 1, single buffered']
    #allocation4 [shape = 's32[1]{0}', space=sflag, size = 0x4, scoped, tag = 'scoped memory for decoder_forward.6']
    %8 = vsyncpa [#allocation4], 0
    // Predicated region
    $region2: #{decoder_forward.6} parent=1 // pred_check
      _
    $region3: #{decoder_forward.6} parent=1 // pred_check_branch
      %10 = sbr.rel (0) target = $region5
    $region4: #{decoder_forward.6} parent=1 // pred_region
      _
    $region5: #{decoder_forward.6} parent=1 // pred_fallthru
      _
    // Predicated region
    $region6: #{decoder_forward.6} parent=1 // pred_check
      _
    $region7: #{decoder_forward.6} parent=1 // pred_check_branch
      %12 = sbr.rel (0) target = $region9
    $region8: #{decoder_forward.6} parent=1 // pred_region
      %s14 = ssub.s32 128, 128
      %15 = vsyncadd [#allocation4], %s14
      %s16 = sshll.u32 [#allocation3], 4
      %s17 = int_to_ptr.vmem [resolvable:$true] %s16
      %22 = dma.hbm_to_vmem [thread:$0]  %s1, 128, %s17, [#allocation4], 64, 64, 4
    $region9: #{decoder_forward.6} parent=1 // pred_fallthru
      _
    // Predicated region
    $region10: #{decoder_forward.6} parent=1 // pred_check
      _
    $region11: #{decoder_forward.6} parent=1 // pred_check_branch
      %24 = sbr.rel (0) target = $region13
    $region12: #{decoder_forward.6} parent=1 // pred_region
      _
    $region13: #{decoder_forward.6} parent=1 // pred_fallthru
      _
    // Predicated region
    $region14: #{decoder_forward.6} parent=1 // pred_check
      _
    $region15: #{decoder_forward.6} parent=1 // pred_check_branch
      %26 = sbr.rel (0) target = $region17
    $region16: #{decoder_forward.6} parent=1 // pred_region
      %27 = dma.done [#allocation4], 128
    $region17: #{decoder_forward.6} parent=1 // pred_fallthru
      _
    %p29 = scmp.eq.s32.totalorder 0, 0
    // Predicated region
    $region18: #{decoder_forward.6} parent=1 // pred_check
      %p30 = pneg %p29
    $region19: #{decoder_forward.6} parent=1 // pred_check_branch
      %32 = sbr.rel (%p30) target = $region21
    $region20: #{decoder_forward.6} parent=1 // pred_region
      %vm33 = vcmask 261120
      %34 = vst.msk [vmem:[#allocation2] sm:$0xff] %vm33, 0.0
      %35 = vst.msk [vmem:[#allocation2 + $0x8] sm:$0xff] %vm33, 0.0
    $region21: #{decoder_forward.6} parent=1 // pred_fallthru
      _
    %v36 = vld [vmem:[#allocation2] sm:$0xff]
    %v37 = vld [vmem:[#allocation2 + $0x8] sm:$0xff]
    %v38 = vld [vmem:[%s0] sm:$0xff]
    %v39 = vld [vmem:[%s0 + $0x8] sm:$0xff]
    %v40 = vpack.c.bf16 %v39, %v38
    %v41 = vld [vmem:[#allocation3] sm:$0xf]
    %v42 = vld [vmem:[#allocation3 + $0x4] sm:$0xf]
    %v45 = vunpack.c.l.b16 %v41
    %v46 = vunpack.c.l.b16 %v42
    %v47 = vpack.c.b16 %v46, %v45
    %vm49 = vcmask 130048
    %v51 = vsel %vm49, %v40, 0
    %53 = vmatprep.subr.bf16.mxu0 0
    %54 = vmatpush1.bf16.msra.mxu0 %v47
    %55 = vmatprep.subr.bf16.mxu0 0
    %56 = vmatpush1.bf16.msra.mxu0 0
    %57 = vmatprep.subr.bf16.mxu0 0
    %58 = vmatpush1.bf16.msra.mxu0 0
    %59 = vmatprep.subr.bf16.mxu0 0
    %60 = vmatpush1.bf16.msra.mxu0 0
    %61 = vmatprep.subr.bf16.mxu0 0
    %62 = vmatpush1.bf16.msra.mxu0 0
    %63 = vmatprep.subr.bf16.mxu0 0
    %64 = vmatpush1.bf16.msra.mxu0 0
    %65 = vmatprep.subr.bf16.mxu0 0
    %66 = vmatpush1.bf16.msra.mxu0 0
    %67 = vmatprep.subr.bf16.mxu0 0
    %68 = vmatpush1.bf16.msra.mxu0 0
    %69 = vmatprep.subr.bf16.mxu0 0
    %70 = vmatpush1.bf16.msra.mxu0 0
    %71 = vmatprep.subr.bf16.mxu0 0
    %72 = vmatpush1.bf16.msra.mxu0 0
    %73 = vmatprep.subr.bf16.mxu0 0
    %74 = vmatpush1.bf16.msra.mxu0 0
    %75 = vmatprep.subr.bf16.mxu0 0
    %76 = vmatpush1.bf16.msra.mxu0 0
    %77 = vmatprep.subr.bf16.mxu0 0
    %78 = vmatpush1.bf16.msra.mxu0 0
    %79 = vmatprep.subr.bf16.mxu0 0
    %80 = vmatpush1.bf16.msra.mxu0 0
    %81 = vmatprep.subr.bf16.mxu0 0
    %82 = vmatpush1.bf16.msra.mxu0 0
    %83 = vmatprep.subr.bf16.mxu0 0
    %84 = vmatpush1.bf16.msra.mxu0 0
    %85 = vmatprep.mubr.bf16.mxu0 0
    %86 = vmatmul.mubr.bf16.gmra.mrb[0].mxu0 %v51
    %v87 = vpop.f32.mrb[0].mxu0
    %v88 = vadd.f32 0.0, %v87
    %v89 = vpop.f32.mrb[0].mxu0
    %v90 = vpop.f32.mrb[0].mxu0
    %v91 = vadd.f32 0.0, %v90
    %v92 = vpop.f32.mrb[0].mxu0
    %93 = vdwg.mxu0
    %v94 = vadd.f32 %v36, %v88
    %v95 = vadd.f32 %v37, %v91
    %vm96 = vcmask 261120
    %97 = vst.msk [vmem:[#allocation2] sm:$0xff] %vm96, %v94
    %98 = vst.msk [vmem:[#allocation2 + $0x8] sm:$0xff] %vm96, %v95
    // Predicated region
    $region22: #{decoder_forward.6} parent=1 // pred_check
      %p99 = pneg %p29
    $region23: #{decoder_forward.6} parent=1 // pred_check_branch
      %101 = sbr.rel (%p99) target = $region25
    $region24: #{decoder_forward.6} parent=1 // pred_region
      %v102 = vld [vmem:[#allocation2] sm:$0xff]
      %v103 = vld [vmem:[#allocation2 + $0x8] sm:$0xff]
      %v104 = vld [vmem:[%s2] sm:$0x1]
      %v106 = vlaneseq
      %v107 = vshrl.u32 %v106, 7
      %v108 = vsub.s32 0, %v107
      %v109 = vrot.slane %v104, %v108
      %v111 = vadd.f32 %v102, %v109
      %v112 = vadd.f32 %v103, %v109
      %v113 = vpack.c.bf16 %v112, %v111
      %v115 = vunpack.c.l.b16 %v113
      %v116 = vunpack.c.h.b16 %v113
      %v117 = vpack.c.b16 %v115, %v115
      %v118 = vpack.c.b16 %v116, %v116
      %vm121 = vcmask 257024
      %122 = vst.msk [vmem:[%s3] sm:$0xf] %vm121, %v117
      %123 = vst.msk [vmem:[%s3 + $0x4] sm:$0xf] %vm121, %v118
    $region25: #{decoder_forward.6} parent=1 // pred_fallthru
      _
    // Predicated region
    $region26: #{decoder_forward.6} parent=1 // pred_check
      _
    $region27: #{decoder_forward.6} parent=1 // pred_check_branch
      %125 = sbr.rel (0) target = $region29
    $region28: #{decoder_forward.6} parent=1 // pred_region
      _
    $region29: #{decoder_forward.6} parent=1 // pred_fallthru
      _
    // Predicated region
    $region30: #{decoder_forward.6} parent=1 // pred_check
      _
    $region31: #{decoder_forward.6} parent=1 // pred_check_branch
      %127 = sbr.rel (0) target = $region33
    $region32: #{decoder_forward.6} parent=1 // pred_region
      _
    $region33: #{decoder_forward.6} parent=1 // pred_fallthru
      _
    %128 = vsyncpa [#allocation4], 1

// kernel: decoder_forward.7
$region0: #{decoder_forward.7}
  #allocation0 [shape = 'u32[]', space=smem, size = 0x4, offset = 0x4, fixed_abs, tag = 'smem constant byte address 0x4 - core index']
  #allocation1 [shape = 'u32[144,128]{1,0:T(1,128)}', space=vmem, size = 0x12000, scoped, tag = 'internal scratch']
  %s0 = inlined_call_operand.vmem [shape: bf16[16,32], index: 0, kind: input, shape index: {}]
  %s1 = inlined_call_operand.vmem [shape: bf16[32,96], index: 1, kind: input, shape index: {}]
  %s2 = inlined_call_operand.vmem [shape: f32[16,32], index: 2, kind: input, shape index: {}]
  %s3 = inlined_call_operand.vmem [shape: bf16[32,96], index: 3, kind: input, shape index: {}]
  %s4 = inlined_call_operand.vmem [shape: f32[1,96], index: 4, kind: input, shape index: {}]
  %s5 = inlined_call_operand.vmem [shape: f32[16,96], index: 5, kind: output, shape index: {}]
  %s6 = sld [smem:[#allocation0]]
  $region30: #{decoder_forward.7} parent=0
    _
  %s8 = ssub.s32 1, %s6
  %s9 = scalar_select 0, %s8, %s6
  // Predicated region
  $region2: #{decoder_forward.7} parent=0 // pred_check
    _
  $region3: #{decoder_forward.7} parent=0 // pred_check_branch
    %11 = sbr.rel (0) target = $region5
  $region4: #{decoder_forward.7} parent=0 // pred_region
    _
  $region5: #{decoder_forward.7} parent=0 // pred_fallthru
    _
  // Predicated region
  $region6: #{decoder_forward.7} parent=0 // pred_check
    _
  $region7: #{decoder_forward.7} parent=0 // pred_check_branch
    %13 = sbr.rel (0) target = $region9
  $region8: #{decoder_forward.7} parent=0 // pred_region
    _
  $region9: #{decoder_forward.7} parent=0 // pred_fallthru
    _
  // Predicated region
  $region10: #{decoder_forward.7} parent=0 // pred_check
    _
  $region11: #{decoder_forward.7} parent=0 // pred_check_branch
    %15 = sbr.rel (0) target = $region13
  $region12: #{decoder_forward.7} parent=0 // pred_region
    _
  $region13: #{decoder_forward.7} parent=0 // pred_fallthru
    _
  // Predicated region
  $region14: #{decoder_forward.7} parent=0 // pred_check
    _
  $region15: #{decoder_forward.7} parent=0 // pred_check_branch
    %17 = sbr.rel (0) target = $region17
  $region16: #{decoder_forward.7} parent=0 // pred_region
    _
  $region17: #{decoder_forward.7} parent=0 // pred_fallthru
    _
  // Predicated region
  $region18: #{decoder_forward.7} parent=0 // pred_check
    _
  $region19: #{decoder_forward.7} parent=0 // pred_check_branch
    %19 = sbr.rel (0) target = $region21
  $region20: #{decoder_forward.7} parent=0 // pred_region
    _
  $region21: #{decoder_forward.7} parent=0 // pred_fallthru
    _
  %v21 = vld [vmem:[%s0] sm:$0xf]
  %v22 = vld [vmem:[%s0 + $0x4] sm:$0xf]
  %v23 = vld [vmem:[%s1] sm:$0xf]
  %v24 = vld [vmem:[%s1 + $0x4] sm:$0xf]
  %v25 = vld [vmem:[%s1 + $0x8] sm:$0xf]
  %v26 = vld [vmem:[%s1 + $0xc] sm:$0xf]
  %v27 = vld [vmem:[%s2] sm:$0xff]
  %v28 = vld [vmem:[%s2 + $0x8] sm:$0xff]
  %v29 = vpack.c.bf16 %v28, %v27
  %v30 = vld [vmem:[%s3] sm:$0xf]
  %v31 = vld [vmem:[%s3 + $0x4] sm:$0xf]
  %v32 = vld [vmem:[%s3 + $0x8] sm:$0xf]
  %v33 = vld [vmem:[%s3 + $0xc] sm:$0xf]
  %v38 = vunpack.c.l.b16 %v30
  %v39 = vunpack.c.l.b16 %v31
  %v40 = vunpack.c.l.b16 %v32
  %v41 = vunpack.c.l.b16 %v33
  %v42 = vpack.c.b16 %v39, %v38
  %v43 = vpack.c.b16 %v41, %v40
  %vm46 = vcmask 261120
  %v48 = vsel %vm46, %v29, 0
  %50 = vmatprep.subr.bf16.mxu0 0
  %51 = vmatpush1.bf16.msra.mxu0 %v42
  %52 = vmatprep.subr.bf16.mxu0 0
  %53 = vmatpush1.bf16.msra.mxu0 %v43
  %54 = vmatprep.subr.bf16.mxu0 0
  %55 = vmatpush1.bf16.msra.mxu0 0
  %56 = vmatprep.subr.bf16.mxu0 0
  %57 = vmatpush1.bf16.msra.mxu0 0
  %58 = vmatprep.subr.bf16.mxu0 0
  %59 = vmatpush1.bf16.msra.mxu0 0
  %60 = vmatprep.subr.bf16.mxu0 0
  %61 = vmatpush1.bf16.msra.mxu0 0
  %62 = vmatprep.subr.bf16.mxu0 0
  %63 = vmatpush1.bf16.msra.mxu0 0
  %64 = vmatprep.subr.bf16.mxu0 0
  %65 = vmatpush1.bf16.msra.mxu0 0
  %66 = vmatprep.subr.bf16.mxu0 0
  %67 = vmatpush1.bf16.msra.mxu0 0
  %68 = vmatprep.subr.bf16.mxu0 0
  %69 = vmatpush1.bf16.msra.mxu0 0
  %70 = vmatprep.subr.bf16.mxu0 0
  %71 = vmatpush1.bf16.msra.mxu0 0
  %72 = vmatprep.subr.bf16.mxu0 0
  %73 = vmatpush1.bf16.msra.mxu0 0
  %74 = vmatprep.subr.bf16.mxu0 0
  %75 = vmatpush1.bf16.msra.mxu0 0
  %76 = vmatprep.subr.bf16.mxu0 0
  %77 = vmatpush1.bf16.msra.mxu0 0
  %78 = vmatprep.subr.bf16.mxu0 0
  %79 = vmatpush1.bf16.msra.mxu0 0
  %80 = vmatprep.subr.bf16.mxu0 0
  %81 = vmatpush1.bf16.msra.mxu0 0
  %82 = vmatprep.mubr.bf16.mxu0 0
  %83 = vmatmul.mubr.bf16.gmra.mrb[0].mxu0 %v48
  %v84 = vpop.f32.mrb[0].mxu0
  %v85 = vadd.f32 0.0, %v84
  %v86 = vpop.f32.mrb[0].mxu0
  %v87 = vpop.f32.mrb[0].mxu0
  %v88 = vadd.f32 0.0, %v87
  %v89 = vpop.f32.mrb[0].mxu0
  %90 = vdwg.mxu0
  %v93 = vunpack.c.l.b16 %v21
  %v94 = vunpack.c.l.b16 %v22
  %v95 = vpack.c.b16 %v94, %v93
  %v100 = vunpack.c.l.b16 %v23
  %v101 = vunpack.c.l.b16 %v24
  %v102 = vunpack.c.l.b16 %v25
  %v103 = vunpack.c.l.b16 %v26
  %v104 = vpack.c.b16 %v101, %v100
  %v105 = vpack.c.b16 %v103, %v102
  %v109 = vsel %vm46, %v95, 0
  %111 = vmatprep.subr.bf16.mxu0 0
  %112 = vmatpush1.bf16.msra.mxu0 %v104
  %113 = vmatprep.subr.bf16.mxu0 0
  %114 = vmatpush1.bf16.msra.mxu0 %v105
  %115 = vmatprep.subr.bf16.mxu0 0
  %116 = vmatpush1.bf16.msra.mxu0 0
  %117 = vmatprep.subr.bf16.mxu0 0
  %118 = vmatpush1.bf16.msra.mxu0 0
  %119 = vmatprep.subr.bf16.mxu0 0
  %120 = vmatpush1.bf16.msra.mxu0 0
  %121 = vmatprep.subr.bf16.mxu0 0
  %122 = vmatpush1.bf16.msra.mxu0 0
  %123 = vmatprep.subr.bf16.mxu0 0
  %124 = vmatpush1.bf16.msra.mxu0 0
  %125 = vmatprep.subr.bf16.mxu0 0
  %126 = vmatpush1.bf16.msra.mxu0 0
  %127 = vmatprep.subr.bf16.mxu0 0
  %128 = vmatpush1.bf16.msra.mxu0 0
  %129 = vmatprep.subr.bf16.mxu0 0
  %130 = vmatpush1.bf16.msra.mxu0 0
  %131 = vmatprep.subr.bf16.mxu0 0
  %132 = vmatpush1.bf16.msra.mxu0 0
  %133 = vmatprep.subr.bf16.mxu0 0
  %134 = vmatpush1.bf16.msra.mxu0 0
  %135 = vmatprep.subr.bf16.mxu0 0
  %136 = vmatpush1.bf16.msra.mxu0 0
  %137 = vmatprep.subr.bf16.mxu0 0
  %138 = vmatpush1.bf16.msra.mxu0 0
  %139 = vmatprep.subr.bf16.mxu0 0
  %140 = vmatpush1.bf16.msra.mxu0 0
  %141 = vmatprep.subr.bf16.mxu0 0
  %142 = vmatpush1.bf16.msra.mxu0 0
  %143 = vmatprep.mubr.bf16.mxu0 0
  %144 = vmatmul.mubr.bf16.gmra.mrb[0].mxu0 %v109
  %v145 = vpop.f32.mrb[0].mxu0
  %v146 = vadd.f32 %v85, %v145
  %v147 = vpop.f32.mrb[0].mxu0
  %v148 = vpop.f32.mrb[0].mxu0
  %v149 = vadd.f32 %v88, %v148
  %v150 = vpop.f32.mrb[0].mxu0
  %151 = vdwg.mxu0
  %v152 = vld [vmem:[%s4] sm:$0x1]
  %v154 = vlaneseq
  %v155 = vshrl.u32 %v154, 7
  %v156 = vsub.s32 0, %v155
  %v157 = vrot.slane %v152, %v156
  %v159 = vadd.f32 %v146, %v157
  %v160 = vadd.f32 %v149, %v157
  %vm161 = vcmask 785408
  %162 = vst.msk [vmem:[%s5] sm:$0xff] %vm161, %v159
  %163 = vst.msk [vmem:[%s5 + $0x8] sm:$0xff] %vm161, %v160
  // Predicated region
  $region22: #{decoder_forward.7} parent=0 // pred_check
    _
  $region23: #{decoder_forward.7} parent=0 // pred_check_branch
    %165 = sbr.rel (0) target = $region25
  $region24: #{decoder_forward.7} parent=0 // pred_region
    _
  $region25: #{decoder_forward.7} parent=0 // pred_fallthru
    _
  // Predicated region
  $region26: #{decoder_forward.7} parent=0 // pred_check
    _
  $region27: #{decoder_forward.7} parent=0 // pred_check_branch
    %167 = sbr.rel (0) target = $region29
  $region28: #{decoder_forward.7} parent=0 // pred_region
    _
  $region29: #{decoder_forward.7} parent=0 // pred_fallthru
    _

// kernel: decoder_forward.8
$region0: #{decoder_forward.8}
  #allocation0 [shape = 'u32[]', space=smem, size = 0x4, offset = 0x4, fixed_abs, tag = 'smem constant byte address 0x4 - core index']
  #allocation1 [shape = 'u32[144,128]{1,0:T(1,128)}', space=vmem, size = 0x12000, scoped, tag = 'internal scratch']
  #allocation2 [shape = 'f32[2,32]{1,0:T(2,128)}', space=vmem, size = 0x400, scoped, tag = 'scratch operand']
  %s0 = inlined_call_operand.vmem [shape: f32[2,8,96], index: 0, kind: input, shape index: {}]
  %s1 = inlined_call_operand.vmem [shape: bf16[32,96], index: 1, kind: input, shape index: {}]
  %s2 = inlined_call_operand.vmem [shape: f32[1,96], index: 2, kind: input, shape index: {}]
  %s3 = inlined_call_operand.vmem [shape: f32[2,32], index: 3, kind: input, shape index: {}]
  %s4 = inlined_call_operand.vmem [shape: bf16[2,8,32], index: 4, kind: output, shape index: {0}]
  %s5 = inlined_call_operand.hbm [shape: f32[2,32], index: 5, kind: output, shape index: {1}]
  %6 = xla_tuple %s4, %s5
  %s7 = sld [smem:[#allocation0]]
  $region42: #{decoder_forward.8} parent=0
    _
  %s9 = ssub.s32 1, %s7
  %s10 = scalar_select 0, %s9, %s7
  $region1: #{decoder_forward.8} parent=0
    #allocation3 [shape = 'u8[1024]{0}', space=vmem, size = 0x400, scoped, tag = 'output window, operand 1, single buffered']
    #allocation4 [shape = 's32[1]{0}', space=sflag, size = 0x4, scoped, tag = 'scoped memory for decoder_forward.8']
    %11 = vsyncpa [#allocation4], 0
    // Predicated region
    $region2: #{decoder_forward.8} parent=1 // pred_check
      _
    $region3: #{decoder_forward.8} parent=1 // pred_check_branch
      %13 = sbr.rel (0) target = $region5
    $region4: #{decoder_forward.8} parent=1 // pred_region
      _
    $region5: #{decoder_forward.8} parent=1 // pred_fallthru
      _
    // Predicated region
    $region6: #{decoder_forward.8} parent=1 // pred_check
      _
    $region7: #{decoder_forward.8} parent=1 // pred_check_branch
      %15 = sbr.rel (0) target = $region9
    $region8: #{decoder_forward.8} parent=1 // pred_region
      _
    $region9: #{decoder_forward.8} parent=1 // pred_fallthru
      _
    // Predicated region
    $region10: #{decoder_forward.8} parent=1 // pred_check
      _
    $region11: #{decoder_forward.8} parent=1 // pred_check_branch
      %17 = sbr.rel (0) target = $region13
    $region12: #{decoder_forward.8} parent=1 // pred_region
      _
    $region13: #{decoder_forward.8} parent=1 // pred_fallthru
      _
    // Predicated region
    $region14: #{decoder_forward.8} parent=1 // pred_check
      _
    $region15: #{decoder_forward.8} parent=1 // pred_check_branch
      %19 = sbr.rel (0) target = $region17
    $region16: #{decoder_forward.8} parent=1 // pred_region
      _
    $region17: #{decoder_forward.8} parent=1 // pred_fallthru
      _
    %p21 = scmp.eq.s32.totalorder 0, 0
    // Predicated region
    $region18: #{decoder_forward.8} parent=1 // pred_check
      %p22 = pneg %p21
    $region19: #{decoder_forward.8} parent=1 // pred_check_branch
      %24 = sbr.rel (%p22) target = $region21
    $region20: #{decoder_forward.8} parent=1 // pred_region
      %v25 = vld [vmem:[%s3] sm:$0x3]
      %vm26 = vcmask 254976
      %27 = vst.msk [vmem:[#allocation2] sm:$0x3] %vm26, %v25
    $region21: #{decoder_forward.8} parent=1 // pred_fallthru
      _
    %v28 = vld [vmem:[%s1] sm:$0xf]
    %v29 = vld [vmem:[%s1 + $0x4] sm:$0xf]
    %v30 = vld [vmem:[%s1 + $0x8] sm:$0xf]
    %v31 = vld [vmem:[%s1 + $0xc] sm:$0xf]
    %v32 = vld [vmem:[%s2] sm:$0x1]
    %v33 = vld [vmem:[#allocation2] sm:$0x3]
    %v34 = vld [vmem:[%s0] sm:$0x1]
    %v35 = vld [vmem:[%s0 + $0x8] sm:$0x1]
    %v36 = vpack.c.bf16 %v33, %v33
    %v38 = vlaneseq
    %v39 = vshrl.u32 %v38, 7
    %v40 = vsub.s32 0, %v39
    %v41 = vrot.slane %v32, %v40
    %v47 = vunpack.c.l.b16 %v28
    %v48 = vunpack.c.l.b16 %v29
    %v49 = vunpack.c.l.b16 %v30
    %v50 = vunpack.c.l.b16 %v31
    %v51 = vpack.c.b16 %v48, %v47
    %v52 = vpack.c.b16 %v50, %v49
    %vm55 = vcmask 261120
    %v57 = vsel %vm55, %v36, 0
    %59 = vmatprep.subr.bf16.mxu0 0
    %60 = vmatpush1.bf16.msra.mxu0 %v51
    %61 = vmatprep.subr.bf16.mxu0 0
    %62 = vmatpush1.bf16.msra.mxu0 %v52
    %63 = vmatprep.subr.bf16.mxu0 0
    %64 = vmatpush1.bf16.msra.mxu0 0
    %65 = vmatprep.subr.bf16.mxu0 0
    %66 = vmatpush1.bf16.msra.mxu0 0
    %67 = vmatprep.subr.bf16.mxu0 0
    %68 = vmatpush1.bf16.msra.mxu0 0
    %69 = vmatprep.subr.bf16.mxu0 0
    %70 = vmatpush1.bf16.msra.mxu0 0
    %71 = vmatprep.subr.bf16.mxu0 0
    %72 = vmatpush1.bf16.msra.mxu0 0
    %73 = vmatprep.subr.bf16.mxu0 0
    %74 = vmatpush1.bf16.msra.mxu0 0
    %75 = vmatprep.subr.bf16.mxu0 0
    %76 = vmatpush1.bf16.msra.mxu0 0
    %77 = vmatprep.subr.bf16.mxu0 0
    %78 = vmatpush1.bf16.msra.mxu0 0
    %79 = vmatprep.subr.bf16.mxu0 0
    %80 = vmatpush1.bf16.msra.mxu0 0
    %81 = vmatprep.subr.bf16.mxu0 0
    %82 = vmatpush1.bf16.msra.mxu0 0
    %83 = vmatprep.subr.bf16.mxu0 0
    %84 = vmatpush1.bf16.msra.mxu0 0
    %85 = vmatprep.subr.bf16.mxu0 0
    %86 = vmatpush1.bf16.msra.mxu0 0
    %87 = vmatprep.subr.bf16.mxu0 0
    %88 = vmatpush1.bf16.msra.mxu0 0
    %89 = vmatprep.subr.bf16.mxu0 0
    %90 = vmatpush1.bf16.msra.mxu0 0
    %91 = vmatprep.mubr.bf16.mxu0 0
    %92 = vmatmul.mubr.bf16.gmra.mrb[0].mxu0 %v57
    %v93 = vpop.f32.mrb[0].mxu0
    %v94 = vadd.f32 %v41, %v93
    %v95 = vpop.f32.mrb[0].mxu0
    %v96 = vpop.f32.mrb[0].mxu0
    %v97 = vpop.f32.mrb[0].mxu0
    %98 = vdwg.mxu0
    %v100 = vrot.slane %v94, 1
    %v103 = vadd.f32 %v34, %v94
    %v104 = vadd.f32 %v35, %v100
    %v105 = vxor.u32 %v103, 2147483648
    %v106 = vxor.u32 %v104, 2147483648
    %v107 = vmul.f32 %v105, 1.442695
    %v108 = vpow.pop %v107
    %v109 = vmul.f32 %v106, 1.442695
    %v110 = vpow.pop %v109
    %v111 = vadd.f32 %v108, 1.0
    %v112 = vadd.f32 %v110, 1.0
    %v113 = vrcp.pop %v111
    %v114 = vmul.f32 1.0, %v113
    %v115 = vrcp.pop %v112
    %v116 = vmul.f32 1.0, %v115
    %117 = vrot.lane.b32.xlu0 %v94, 64
    %v118 = vpop.permute.xlu0 %117
    %119 = vrot.lane.b32.xlu0 %v100, 64
    %v120 = vpop.permute.xlu0 %119
    %v123 = vmul.f32 %v114, %v118
    %v124 = vmul.f32 %v116, %v120
    %127 = vrot.lane.b32.xlu0 %v123, 64
    %v128 = vpop.permute.xlu0 %127
    %129 = vrot.lane.b32.xlu0 %v124, 64
    %v130 = vpop.permute.xlu0 %129
    %v133 = vadd.f32 %v34, %v128
    %v134 = vadd.f32 %v35, %v130
    %v135 = vtanh.pop %v133
    %v136 = vtanh.pop %v134
    %v137 = vsub.f32 1.0, %v114
    %v138 = vsub.f32 1.0, %v116
    %141 = vrot.lane.b32.xlu0 %v135, 96
    %v142 = vpop.permute.xlu0 %141
    %143 = vrot.lane.b32.xlu0 %v136, 96
    %v144 = vpop.permute.xlu0 %143
    %v147 = vmul.f32 %v137, %v142
    %v148 = vmul.f32 %v138, %v144
    %v150 = vrot.slane %v33, 1
    %151 = vrot.lane.b32.xlu0 %v33, 32
    %v152 = vpop.permute.xlu0 %151
    %153 = vrot.lane.b32.xlu0 %v150, 32
    %v154 = vpop.permute.xlu0 %153
    %v157 = vmul.f32 %v114, %v152
    %v158 = vmul.f32 %v116, %v154
    %v159 = vadd.f32 %v147, %v157
    %v160 = vadd.f32 %v148, %v158
    %v161 = vpack.c.bf16 %v159, %v159
    %v162 = vpack.c.bf16 %v160, %v160
    %v165 = vunpack.c.l.b16 %v161
    %v166 = vunpack.c.l.b16 %v162
    %v167 = vpack.c.b16 %v165, %v165
    %v168 = vpack.c.b16 %v166, %v166
    %169 = vrot.lane.b32.xlu0 %v167, 96
    %v170 = vpop.permute.xlu0 %169
    %171 = vrot.lane.b32.xlu0 %v168, 96
    %v172 = vpop.permute.xlu0 %171
    %vm175 = vcmask 253952
    %vm176 = vsmask.f32 256
    %vm177 = vmand %vm175, %vm176
    %v178 = vld [vmem:[%s4] sm:$0x1]
    %v179 = vsel %vm177, %v170, %v178
    %180 = vst [vmem:[%s4] sm:$0x1] %v179
    %v181 = vld [vmem:[%s4 + $0x4] sm:$0x1]
    %v182 = vsel %vm177, %v172, %v181
    %183 = vst [vmem:[%s4 + $0x4] sm:$0x1] %v182
    %v184 = vld [vmem:[%s0 + $0x1] sm:$0x1]
    %v185 = vld [vmem:[%s0 + $0x9] sm:$0x1]
    %v186 = vrot.slane %v166, 7
    %vm187 = vcmask 1041409
    %v188 = vsel %vm187, %v186, %v165
    %v189 = vpack.c.b16 %v188, %v188
    %190 = vrot.lane.b32.xlu0 %v189, 96
    %v191 = vpop.permute.xlu0 %190
    %v193 = vsel %vm55, %v191, 0
    %195 = vmatprep.subr.bf16.mxu0 0
    %196 = vmatpush1.bf16.msra.mxu0 %v51
    %197 = vmatprep.subr.bf16.mxu0 0
    %198 = vmatpush1.bf16.msra.mxu0 %v52
    %199 = vmatprep.subr.bf16.mxu0 0
    %200 = vmatpush1.bf16.msra.mxu0 0
    %201 = vmatprep.subr.bf16.mxu0 0
    %202 = vmatpush1.bf16.msra.mxu0 0
    %203 = vmatprep.subr.bf16.mxu0 0
    %204 = vmatpush1.bf16.msra.mxu0 0
    %205 = vmatprep.subr.bf16.mxu0 0
    %206 = vmatpush1.bf16.msra.mxu0 0
    %207 = vmatprep.subr.bf16.mxu0 0
    %208 = vmatpush1.bf16.msra.mxu0 0
    %209 = vmatprep.subr.bf16.mxu0 0
    %210 = vmatpush1.bf16.msra.mxu0 0
    %211 = vmatprep.subr.bf16.mxu0 0
    %212 = vmatpush1.bf16.msra.mxu0 0
    %213 = vmatprep.subr.bf16.mxu0 0
    %214 = vmatpush1.bf16.msra.mxu0 0
    %215 = vmatprep.subr.bf16.mxu0 0
    %216 = vmatpush1.bf16.msra.mxu0 0
    %217 = vmatprep.subr.bf16.mxu0 0
    %218 = vmatpush1.bf16.msra.mxu0 0
    %219 = vmatprep.subr.bf16.mxu0 0
    %220 = vmatpush1.bf16.msra.mxu0 0
    %221 = vmatprep.subr.bf16.mxu0 0
    %222 = vmatpush1.bf16.msra.mxu0 0
    %223 = vmatprep.subr.bf16.mxu0 0
    %224 = vmatpush1.bf16.msra.mxu0 0
    %225 = vmatprep.subr.bf16.mxu0 0
    %226 = vmatpush1.bf16.msra.mxu0 0
    %227 = vmatprep.mubr.bf16.mxu0 0
    %228 = vmatmul.mubr.bf16.gmra.mrb[0].mxu0 %v193
    %v229 = vpop.f32.mrb[0].mxu0
    %v230 = vadd.f32 %v41, %v229
    %v231 = vpop.f32.mrb[0].mxu0
    %v232 = vpop.f32.mrb[0].mxu0
    %v233 = vpop.f32.mrb[0].mxu0
    %234 = vdwg.mxu0
    %v236 = vrot.slane %v230, 1
    %v239 = vadd.f32 %v184, %v230
    %v240 = vadd.f32 %v185, %v236
    %v241 = vxor.u32 %v239, 2147483648
    %v242 = vxor.u32 %v240, 2147483648
    %v243 = vmul.f32 %v241, 1.442695
    %v244 = vpow.pop %v243
    %v245 = vmul.f32 %v242, 1.442695
    %v246 = vpow.pop %v245
    %v247 = vadd.f32 %v244, 1.0
    %v248 = vadd.f32 %v246, 1.0
    %v249 = vrcp.pop %v247
    %v250 = vmul.f32 1.0, %v249
    %v251 = vrcp.pop %v248
    %v252 = vmul.f32 1.0, %v251
    %253 = vrot.lane.b32.xlu0 %v230, 64
    %v254 = vpop.permute.xlu0 %253
    %255 = vrot.lane.b32.xlu0 %v236, 64
    %v256 = vpop.permute.xlu0 %255
    %v259 = vmul.f32 %v250, %v254
    %v260 = vmul.f32 %v252, %v256
    %263 = vrot.lane.b32.xlu0 %v259, 64
    %v264 = vpop.permute.xlu0 %263
    %265 = vrot.lane.b32.xlu0 %v260, 64
    %v266 = vpop.permute.xlu0 %265
    %v269 = vadd.f32 %v184, %v264
    %v270 = vadd.f32 %v185, %v266
    %v271 = vtanh.pop %v269
    %v272 = vtanh.pop %v270
    %v273 = vsub.f32 1.0, %v250
    %v274 = vsub.f32 1.0, %v252
    %277 = vrot.lane.b32.xlu0 %v271, 96
    %v278 = vpop.permute.xlu0 %277
    %279 = vrot.lane.b32.xlu0 %v272, 96
    %v280 = vpop.permute.xlu0 %279
    %v283 = vmul.f32 %v273, %v278
    %v284 = vmul.f32 %v274, %v280
    %v285 = vmul.f32 %v250, %v159
    %v286 = vmul.f32 %v252, %v160
    %v287 = vadd.f32 %v283, %v285
    %v288 = vadd.f32 %v284, %v286
    %v289 = vpack.c.bf16 %v287, %v287
    %v290 = vpack.c.bf16 %v288, %v288
    %v293 = vunpack.c.l.b16 %v289
    %v294 = vunpack.c.l.b16 %v290
    %v295 = vpack.c.b16 %v293, %v293
    %v296 = vpack.c.b16 %v294, %v294
    %v298 = vshll.u32 %v295, 16
    %v301 = vshll.u32 %v296, 16
    %303 = vrot.lane.b32.xlu0 %v298, 96
    %v304 = vpop.permute.xlu0 %303
    %305 = vrot.lane.b32.xlu0 %v301, 96
    %v306 = vpop.permute.xlu0 %305
    %vm309 = vsmask.f32 7938
    %vm310 = vmand %vm175, %vm309
    %v311 = vld [vmem:[%s4] sm:$0x1]
    %v312 = vsel %vm310, %v304, %v311
    %313 = vst [vmem:[%s4] sm:$0x1] %v312
    %v314 = vld [vmem:[%s4 + $0x4] sm:$0x1]
    %v315 = vsel %vm310, %v306, %v314
    %316 = vst [vmem:[%s4 + $0x4] sm:$0x1] %v315
    %v317 = vld [vmem:[%s0 + $0x2] sm:$0x1]
    %v318 = vld [vmem:[%s0 + $0xa] sm:$0x1]
    %v319 = vrot.slane %v294, 7
    %v320 = vsel %vm187, %v319, %v293
    %v321 = vpack.c.b16 %v320, %v320
    %322 = vrot.lane.b32.xlu0 %v321, 96
    %v323 = vpop.permute.xlu0 %322
    %v325 = vsel %vm55, %v323, 0
    %327 = vmatprep.subr.bf16.mxu0 0
    %328 = vmatpush1.bf16.msra.mxu0 %v51
    %329 = vmatprep.subr.bf16.mxu0 0
    %330 = vmatpush1.bf16.msra.mxu0 %v52
    %331 = vmatprep.subr.bf16.mxu0 0
    %332 = vmatpush1.bf16.msra.mxu0 0
    %333 = vmatprep.subr.bf16.mxu0 0
    %334 = vmatpush1.bf16.msra.mxu0 0
    %335 = vmatprep.subr.bf16.mxu0 0
    %336 = vmatpush1.bf16.msra.mxu0 0
    %337 = vmatprep.subr.bf16.mxu0 0
    %338 = vmatpush1.bf16.msra.mxu0 0
    %339 = vmatprep.subr.bf16.mxu0 0
    %340 = vmatpush1.bf16.msra.mxu0 0
    %341 = vmatprep.subr.bf16.mxu0 0
    %342 = vmatpush1.bf16.msra.mxu0 0
    %343 = vmatprep.subr.bf16.mxu0 0
    %344 = vmatpush1.bf16.msra.mxu0 0
    %345 = vmatprep.subr.bf16.mxu0 0
    %346 = vmatpush1.bf16.msra.mxu0 0
    %347 = vmatprep.subr.bf16.mxu0 0
    %348 = vmatpush1.bf16.msra.mxu0 0
    %349 = vmatprep.subr.bf16.mxu0 0
    %350 = vmatpush1.bf16.msra.mxu0 0
    %351 = vmatprep.subr.bf16.mxu0 0
    %352 = vmatpush1.bf16.msra.mxu0 0
    %353 = vmatprep.subr.bf16.mxu0 0
    %354 = vmatpush1.bf16.msra.mxu0 0
    %355 = vmatprep.subr.bf16.mxu0 0
    %356 = vmatpush1.bf16.msra.mxu0 0
    %357 = vmatprep.subr.bf16.mxu0 0
    %358 = vmatpush1.bf16.msra.mxu0 0
    %359 = vmatprep.mubr.bf16.mxu0 0
    %360 = vmatmul.mubr.bf16.gmra.mrb[0].mxu0 %v325
    %v361 = vpop.f32.mrb[0].mxu0
    %v362 = vadd.f32 %v41, %v361
    %v363 = vpop.f32.mrb[0].mxu0
    %v364 = vpop.f32.mrb[0].mxu0
    %v365 = vpop.f32.mrb[0].mxu0
    %366 = vdwg.mxu0
    %v368 = vrot.slane %v362, 1
    %v371 = vadd.f32 %v317, %v362
    %v372 = vadd.f32 %v318, %v368
    %v373 = vxor.u32 %v371, 2147483648
    %v374 = vxor.u32 %v372, 2147483648
    %v375 = vmul.f32 %v373, 1.442695
    %v376 = vpow.pop %v375
    %v377 = vmul.f32 %v374, 1.442695
    %v378 = vpow.pop %v377
    %v379 = vadd.f32 %v376, 1.0
    %v380 = vadd.f32 %v378, 1.0
    %v381 = vrcp.pop %v379
    %v382 = vmul.f32 1.0, %v381
    %v383 = vrcp.pop %v380
    %v384 = vmul.f32 1.0, %v383
    %385 = vrot.lane.b32.xlu0 %v362, 64
    %v386 = vpop.permute.xlu0 %385
    %387 = vrot.lane.b32.xlu0 %v368, 64
    %v388 = vpop.permute.xlu0 %387
    %v391 = vmul.f32 %v382, %v386
    %v392 = vmul.f32 %v384, %v388
    %395 = vrot.lane.b32.xlu0 %v391, 64
    %v396 = vpop.permute.xlu0 %395
    %397 = vrot.lane.b32.xlu0 %v392, 64
    %v398 = vpop.permute.xlu0 %397
    %v401 = vadd.f32 %v317, %v396
    %v402 = vadd.f32 %v318, %v398
    %v403 = vtanh.pop %v401
    %v404 = vtanh.pop %v402
    %v405 = vsub.f32 1.0, %v382
    %v406 = vsub.f32 1.0, %v384
    %409 = vrot.lane.b32.xlu0 %v403, 96
    %v410 = vpop.permute.xlu0 %409
    %411 = vrot.lane.b32.xlu0 %v404, 96
    %v412 = vpop.permute.xlu0 %411
    %v415 = vmul.f32 %v405, %v410
    %v416 = vmul.f32 %v406, %v412
    %v417 = vmul.f32 %v382, %v287
    %v418 = vmul.f32 %v384, %v288
    %v419 = vadd.f32 %v415, %v417
    %v420 = vadd.f32 %v416, %v418
    %v421 = vpack.c.bf16 %v419, %v419
    %v422 = vpack.c.bf16 %v420, %v420
    %v425 = vunpack.c.l.b16 %v421
    %v426 = vunpack.c.l.b16 %v422
    %v427 = vpack.c.b16 %v425, %v425
    %v428 = vpack.c.b16 %v426, %v426
    %v429 = vrot.slane %v427, 7
    %v430 = vrot.slane %v428, 7
    %431 = vrot.lane.b32.xlu0 %v429, 96
    %v432 = vpop.permute.xlu0 %431
    %433 = vrot.lane.b32.xlu0 %v430, 96
    %v434 = vpop.permute.xlu0 %433
    %vm437 = vcmask 254977
    %vm438 = vsmask.f32 1280
    %vm439 = vmand %vm437, %vm438
    %v440 = vld [vmem:[%s4] sm:$0x2]
    %v441 = vsel %vm439, %v432, %v440
    %442 = vst [vmem:[%s4] sm:$0x2] %v441
    %v443 = vld [vmem:[%s4 + $0x4] sm:$0x2]
    %v444 = vsel %vm439, %v434, %v443
    %445 = vst [vmem:[%s4 + $0x4] sm:$0x2] %v444
    %v446 = vld [vmem:[%s0 + $0x3] sm:$0x1]
    %v447 = vld [vmem:[%s0 + $0xb] sm:$0x1]
    %v448 = vrot.slane %v426, 7
    %v449 = vsel %vm187, %v448, %v425
    %v450 = vpack.c.b16 %v449, %v449
    %451 = vrot.lane.b32.xlu0 %v450, 96
    %v452 = vpop.permute.xlu0 %451
    %v454 = vsel %vm55, %v452, 0
    %456 = vmatprep.subr.bf16.mxu0 0
    %457 = vmatpush1.bf16.msra.mxu0 %v51
    %458 = vmatprep.subr.bf16.mxu0 0
    %459 = vmatpush1.bf16.msra.mxu0 %v52
    %460 = vmatprep.subr.bf16.mxu0 0
    %461 = vmatpush1.bf16.msra.mxu0 0
    %462 = vmatprep.subr.bf16.mxu0 0
    %463 = vmatpush1.bf16.msra.mxu0 0
    %464 = vmatprep.subr.bf16.mxu0 0
    %465 = vmatpush1.bf16.msra.mxu0 0
    %466 = vmatprep.subr.bf16.mxu0 0
    %467 = vmatpush1.bf16.msra.mxu0 0
    %468 = vmatprep.subr.bf16.mxu0 0
    %469 = vmatpush1.bf16.msra.mxu0 0
    %470 = vmatprep.subr.bf16.mxu0 0
    %471 = vmatpush1.bf16.msra.mxu0 0
    %472 = vmatprep.subr.bf16.mxu0 0
    %473 = vmatpush1.bf16.msra.mxu0 0
    %474 = vmatprep.subr.bf16.mxu0 0
    %475 = vmatpush1.bf16.msra.mxu0 0
    %476 = vmatprep.subr.bf16.mxu0 0
    %477 = vmatpush1.bf16.msra.mxu0 0
    %478 = vmatprep.subr.bf16.mxu0 0
    %479 = vmatpush1.bf16.msra.mxu0 0
    %480 = vmatprep.subr.bf16.mxu0 0
    %481 = vmatpush1.bf16.msra.mxu0 0
    %482 = vmatprep.subr.bf16.mxu0 0
    %483 = vmatpush1.bf16.msra.mxu0 0
    %484 = vmatprep.subr.bf16.mxu0 0
    %485 = vmatpush1.bf16.msra.mxu0 0
    %486 = vmatprep.subr.bf16.mxu0 0
    %487 = vmatpush1.bf16.msra.mxu0 0
    %488 = vmatprep.mubr.bf16.mxu0 0
    %489 = vmatmul.mubr.bf16.gmra.mrb[0].mxu0 %v454
    %v490 = vpop.f32.mrb[0].mxu0
    %v491 = vadd.f32 %v41, %v490
    %v492 = vpop.f32.mrb[0].mxu0
    %v493 = vpop.f32.mrb[0].mxu0
    %v494 = vpop.f32.mrb[0].mxu0
    %495 = vdwg.mxu0
    %v497 = vrot.slane %v491, 1
    %v500 = vadd.f32 %v446, %v491
    %v501 = vadd.f32 %v447, %v497
    %v502 = vxor.u32 %v500, 2147483648
    %v503 = vxor.u32 %v501, 2147483648
    %v504 = vmul.f32 %v502, 1.442695
    %v505 = vpow.pop %v504
    %v506 = vmul.f32 %v503, 1.442695
    %v507 = vpow.pop %v506
    %v508 = vadd.f32 %v505, 1.0
    %v509 = vadd.f32 %v507, 1.0
    %v510 = vrcp.pop %v508
    %v511 = vmul.f32 1.0, %v510
    %v512 = vrcp.pop %v509
    %v513 = vmul.f32 1.0, %v512
    %514 = vrot.lane.b32.xlu0 %v491, 64
    %v515 = vpop.permute.xlu0 %514
    %516 = vrot.lane.b32.xlu0 %v497, 64
    %v517 = vpop.permute.xlu0 %516
    %v520 = vmul.f32 %v511, %v515
    %v521 = vmul.f32 %v513, %v517
    %524 = vrot.lane.b32.xlu0 %v520, 64
    %v525 = vpop.permute.xlu0 %524
    %526 = vrot.lane.b32.xlu0 %v521, 64
    %v527 = vpop.permute.xlu0 %526
    %v530 = vadd.f32 %v446, %v525
    %v531 = vadd.f32 %v447, %v527
    %v532 = vtanh.pop %v530
    %v533 = vtanh.pop %v531
    %v534 = vsub.f32 1.0, %v511
    %v535 = vsub.f32 1.0, %v513
    %538 = vrot.lane.b32.xlu0 %v532, 96
    %v539 = vpop.permute.xlu0 %538
    %540 = vrot.lane.b32.xlu0 %v533, 96
    %v541 = vpop.permute.xlu0 %540
    %v544 = vmul.f32 %v534, %v539
    %v545 = vmul.f32 %v535, %v541
    %v546 = vmul.f32 %v511, %v419
    %v547 = vmul.f32 %v513, %v420
    %v548 = vadd.f32 %v544, %v546
    %v549 = vadd.f32 %v545, %v547
    %v550 = vpack.c.bf16 %v548, %v548
    %v551 = vpack.c.bf16 %v549, %v549
    %v554 = vunpack.c.l.b16 %v550
    %v555 = vunpack.c.l.b16 %v551
    %v556 = vpack.c.b16 %v554, %v554
    %v557 = vpack.c.b16 %v555, %v555
    %v559 = vshll.u32 %v556, 16
    %v561 = vrot.slane %v559, 7
    %v563 = vshll.u32 %v557, 16
    %v565 = vrot.slane %v563, 7
    %566 = vrot.lane.b32.xlu0 %v561, 96
    %v567 = vpop.permute.xlu0 %566
    %568 = vrot.lane.b32.xlu0 %v565, 96
    %v569 = vpop.permute.xlu0 %568
    %vm572 = vsmask.f32 7942
    %vm573 = vmand %vm437, %vm572
    %v574 = vld [vmem:[%s4] sm:$0x2]
    %v575 = vsel %vm573, %v567, %v574
    %576 = vst [vmem:[%s4] sm:$0x2] %v575
    %v577 = vld [vmem:[%s4 + $0x4] sm:$0x2]
    %v578 = vsel %vm573, %v569, %v577
    %579 = vst [vmem:[%s4 + $0x4] sm:$0x2] %v578
    %v580 = vld [vmem:[%s0 + $0x4] sm:$0x1]
    %v581 = vld [vmem:[%s0 + $0xc] sm:$0x1]
    %v582 = vrot.slane %v555, 7
    %v583 = vsel %vm187, %v582, %v554
    %v584 = vpack.c.b16 %v583, %v583
    %585 = vrot.lane.b32.xlu0 %v584, 96
    %v586 = vpop.permute.xlu0 %585
    %v588 = vsel %vm55, %v586, 0
    %590 = vmatprep.subr.bf16.mxu0 0
    %591 = vmatpush1.bf16.msra.mxu0 %v51
    %592 = vmatprep.subr.bf16.mxu0 0
    %593 = vmatpush1.bf16.msra.mxu0 %v52
    %594 = vmatprep.subr.bf16.mxu0 0
    %595 = vmatpush1.bf16.msra.mxu0 0
    %596 = vmatprep.subr.bf16.mxu0 0
    %597 = vmatpush1.bf16.msra.mxu0 0
    %598 = vmatprep.subr.bf16.mxu0 0
    %599 = vmatpush1.bf16.msra.mxu0 0
    %600 = vmatprep.subr.bf16.mxu0 0
    %601 = vmatpush1.bf16.msra.mxu0 0
    %602 = vmatprep.subr.bf16.mxu0 0
    %603 = vmatpush1.bf16.msra.mxu0 0
    %604 = vmatprep.subr.bf16.mxu0 0
    %605 = vmatpush1.bf16.msra.mxu0 0
    %606 = vmatprep.subr.bf16.mxu0 0
    %607 = vmatpush1.bf16.msra.mxu0 0
    %608 = vmatprep.subr.bf16.mxu0 0
    %609 = vmatpush1.bf16.msra.mxu0 0
    %610 = vmatprep.subr.bf16.mxu0 0
    %611 = vmatpush1.bf16.msra.mxu0 0
    %612 = vmatprep.subr.bf16.mxu0 0
    %613 = vmatpush1.bf16.msra.mxu0 0
    %614 = vmatprep.subr.bf16.mxu0 0
    %615 = vmatpush1.bf16.msra.mxu0 0
    %616 = vmatprep.subr.bf16.mxu0 0
    %617 = vmatpush1.bf16.msra.mxu0 0
    %618 = vmatprep.subr.bf16.mxu0 0
    %619 = vmatpush1.bf16.msra.mxu0 0
    %620 = vmatprep.subr.bf16.mxu0 0
    %621 = vmatpush1.bf16.msra.mxu0 0
    %622 = vmatprep.mubr.bf16.mxu0 0
    %623 = vmatmul.mubr.bf16.gmra.mrb[0].mxu0 %v588
    %v624 = vpop.f32.mrb[0].mxu0
    %v625 = vadd.f32 %v41, %v624
    %v626 = vpop.f32.mrb[0].mxu0
    %v627 = vpop.f32.mrb[0].mxu0
    %v628 = vpop.f32.mrb[0].mxu0
    %629 = vdwg.mxu0
    %v631 = vrot.slane %v625, 1
    %v634 = vadd.f32 %v580, %v625
    %v635 = vadd.f32 %v581, %v631
    %v636 = vxor.u32 %v634, 2147483648
    %v637 = vxor.u32 %v635, 2147483648
    %v638 = vmul.f32 %v636, 1.442695
    %v639 = vpow.pop %v638
    %v640 = vmul.f32 %v637, 1.442695
    %v641 = vpow.pop %v640
    %v642 = vadd.f32 %v639, 1.0
    %v643 = vadd.f32 %v641, 1.0
    %v644 = vrcp.pop %v642
    %v645 = vmul.f32 1.0, %v644
    %v646 = vrcp.pop %v643
    %v647 = vmul.f32 1.0, %v646
    %648 = vrot.lane.b32.xlu0 %v625, 64
    %v649 = vpop.permute.xlu0 %648
    %650 = vrot.lane.b32.xlu0 %v631, 64
    %v651 = vpop.permute.xlu0 %650
    %v654 = vmul.f32 %v645, %v649
    %v655 = vmul.f32 %v647, %v651
    %658 = vrot.lane.b32.xlu0 %v654, 64
    %v659 = vpop.permute.xlu0 %658
    %660 = vrot.lane.b32.xlu0 %v655, 64
    %v661 = vpop.permute.xlu0 %660
    %v664 = vadd.f32 %v580, %v659
    %v665 = vadd.f32 %v581, %v661
    %v666 = vtanh.pop %v664
    %v667 = vtanh.pop %v665
    %v668 = vsub.f32 1.0, %v645
    %v669 = vsub.f32 1.0, %v647
    %672 = vrot.lane.b32.xlu0 %v666, 96
    %v673 = vpop.permute.xlu0 %672
    %674 = vrot.lane.b32.xlu0 %v667, 96
    %v675 = vpop.permute.xlu0 %674
    %v678 = vmul.f32 %v668, %v673
    %v679 = vmul.f32 %v669, %v675
    %v680 = vmul.f32 %v645, %v548
    %v681 = vmul.f32 %v647, %v549
    %v682 = vadd.f32 %v678, %v680
    %v683 = vadd.f32 %v679, %v681
    %v684 = vpack.c.bf16 %v682, %v682
    %v685 = vpack.c.bf16 %v683, %v683
    %v688 = vunpack.c.l.b16 %v684
    %v689 = vunpack.c.l.b16 %v685
    %v690 = vpack.c.b16 %v688, %v688
    %v691 = vpack.c.b16 %v689, %v689
    %v692 = vrot.slane %v690, 6
    %v693 = vrot.slane %v691, 6
    %694 = vrot.lane.b32.xlu0 %v692, 96
    %v695 = vpop.permute.xlu0 %694
    %696 = vrot.lane.b32.xlu0 %v693, 96
    %v697 = vpop.permute.xlu0 %696
    %vm700 = vcmask 256002
    %vm701 = vsmask.f32 2304
    %vm702 = vmand %vm700, %vm701
    %v703 = vld [vmem:[%s4] sm:$0x4]
    %v704 = vsel %vm702, %v695, %v703
    %705 = vst [vmem:[%s4] sm:$0x4] %v704
    %v706 = vld [vmem:[%s4 + $0x4] sm:$0x4]
    %v707 = vsel %vm702, %v697, %v706
    %708 = vst [vmem:[%s4 + $0x4] sm:$0x4] %v707
    %v709 = vld [vmem:[%s0 + $0x5] sm:$0x1]
    %v710 = vld [vmem:[%s0 + $0xd] sm:$0x1]
    %v711 = vrot.slane %v689, 7
    %v712 = vsel %vm187, %v711, %v688
    %v713 = vpack.c.b16 %v712, %v712
    %714 = vrot.lane.b32.xlu0 %v713, 96
    %v715 = vpop.permute.xlu0 %714
    %v717 = vsel %vm55, %v715, 0
    %719 = vmatprep.subr.bf16.mxu0 0
    %720 = vmatpush1.bf16.msra.mxu0 %v51
    %721 = vmatprep.subr.bf16.mxu0 0
    %722 = vmatpush1.bf16.msra.mxu0 %v52
    %723 = vmatprep.subr.bf16.mxu0 0
    %724 = vmatpush1.bf16.msra.mxu0 0
    %725 = vmatprep.subr.bf16.mxu0 0
    %726 = vmatpush1.bf16.msra.mxu0 0
    %727 = vmatprep.subr.bf16.mxu0 0
    %728 = vmatpush1.bf16.msra.mxu0 0
    %729 = vmatprep.subr.bf16.mxu0 0
    %730 = vmatpush1.bf16.msra.mxu0 0
    %731 = vmatprep.subr.bf16.mxu0 0
    %732 = vmatpush1.bf16.msra.mxu0 0
    %733 = vmatprep.subr.bf16.mxu0 0
    %734 = vmatpush1.bf16.msra.mxu0 0
    %735 = vmatprep.subr.bf16.mxu0 0
    %736 = vmatpush1.bf16.msra.mxu0 0
    %737 = vmatprep.subr.bf16.mxu0 0
    %738 = vmatpush1.bf16.msra.mxu0 0
    %739 = vmatprep.subr.bf16.mxu0 0
    %740 = vmatpush1.bf16.msra.mxu0 0
    %741 = vmatprep.subr.bf16.mxu0 0
    %742 = vmatpush1.bf16.msra.mxu0 0
    %743 = vmatprep.subr.bf16.mxu0 0
    %744 = vmatpush1.bf16.msra.mxu0 0
    %745 = vmatprep.subr.bf16.mxu0 0
    %746 = vmatpush1.bf16.msra.mxu0 0
    %747 = vmatprep.subr.bf16.mxu0 0
    %748 = vmatpush1.bf16.msra.mxu0 0
    %749 = vmatprep.subr.bf16.mxu0 0
    %750 = vmatpush1.bf16.msra.mxu0 0
    %751 = vmatprep.mubr.bf16.mxu0 0
    %752 = vmatmul.mubr.bf16.gmra.mrb[0].mxu0 %v717
    %v753 = vpop.f32.mrb[0].mxu0
    %v754 = vadd.f32 %v41, %v753
    %v755 = vpop.f32.mrb[0].mxu0
    %v756 = vpop.f32.mrb[0].mxu0
    %v757 = vpop.f32.mrb[0].mxu0
    %758 = vdwg.mxu0
    %v760 = vrot.slane %v754, 1
    %v763 = vadd.f32 %v709, %v754
    %v764 = vadd.f32 %v710, %v760
    %v765 = vxor.u32 %v763, 2147483648
    %v766 = vxor.u32 %v764, 2147483648
    %v767 = vmul.f32 %v765, 1.442695
    %v768 = vpow.pop %v767
    %v769 = vmul.f32 %v766, 1.442695
    %v770 = vpow.pop %v769
    %v771 = vadd.f32 %v768, 1.0
    %v772 = vadd.f32 %v770, 1.0
    %v773 = vrcp.pop %v771
    %v774 = vmul.f32 1.0, %v773
    %v775 = vrcp.pop %v772
    %v776 = vmul.f32 1.0, %v775
    %777 = vrot.lane.b32.xlu0 %v754, 64
    %v778 = vpop.permute.xlu0 %777
    %779 = vrot.lane.b32.xlu0 %v760, 64
    %v780 = vpop.permute.xlu0 %779
    %v783 = vmul.f32 %v774, %v778
    %v784 = vmul.f32 %v776, %v780
    %787 = vrot.lane.b32.xlu0 %v783, 64
    %v788 = vpop.permute.xlu0 %787
    %789 = vrot.lane.b32.xlu0 %v784, 64
    %v790 = vpop.permute.xlu0 %789
    %v793 = vadd.f32 %v709, %v788
    %v794 = vadd.f32 %v710, %v790
    %v795 = vtanh.pop %v793
    %v796 = vtanh.pop %v794
    %v797 = vsub.f32 1.0, %v774
    %v798 = vsub.f32 1.0, %v776
    %801 = vrot.lane.b32.xlu0 %v795, 96
    %v802 = vpop.permute.xlu0 %801
    %803 = vrot.lane.b32.xlu0 %v796, 96
    %v804 = vpop.permute.xlu0 %803
    %v807 = vmul.f32 %v797, %v802
    %v808 = vmul.f32 %v798, %v804
    %v809 = vmul.f32 %v774, %v682
    %v810 = vmul.f32 %v776, %v683
    %v811 = vadd.f32 %v807, %v809
    %v812 = vadd.f32 %v808, %v810
    %v813 = vpack.c.bf16 %v811, %v811
    %v814 = vpack.c.bf16 %v812, %v812
    %v817 = vunpack.c.l.b16 %v813
    %v818 = vunpack.c.l.b16 %v814
    %v819 = vpack.c.b16 %v817, %v817
    %v820 = vpack.c.b16 %v818, %v818
    %v822 = vshll.u32 %v819, 16
    %v824 = vrot.slane %v822, 6
    %v826 = vshll.u32 %v820, 16
    %v828 = vrot.slane %v826, 6
    %829 = vrot.lane.b32.xlu0 %v824, 96
    %v830 = vpop.permute.xlu0 %829
    %831 = vrot.lane.b32.xlu0 %v828, 96
    %v832 = vpop.permute.xlu0 %831
    %vm835 = vsmask.f32 7946
    %vm836 = vmand %vm700, %vm835
    %v837 = vld [vmem:[%s4] sm:$0x4]
    %v838 = vsel %vm836, %v830, %v837
    %839 = vst [vmem:[%s4] sm:$0x4] %v838
    %v840 = vld [vmem:[%s4 + $0x4] sm:$0x4]
    %v841 = vsel %vm836, %v832, %v840
    %842 = vst [vmem:[%s4 + $0x4] sm:$0x4] %v841
    %v843 = vld [vmem:[%s0 + $0x6] sm:$0x1]
    %v844 = vld [vmem:[%s0 + $0xe] sm:$0x1]
    %v845 = vrot.slane %v818, 7
    %v846 = vsel %vm187, %v845, %v817
    %v847 = vpack.c.b16 %v846, %v846
    %848 = vrot.lane.b32.xlu0 %v847, 96
    %v849 = vpop.permute.xlu0 %848
    %v851 = vsel %vm55, %v849, 0
    %853 = vmatprep.subr.bf16.mxu0 0
    %854 = vmatpush1.bf16.msra.mxu0 %v51
    %855 = vmatprep.subr.bf16.mxu0 0
    %856 = vmatpush1.bf16.msra.mxu0 %v52
    %857 = vmatprep.subr.bf16.mxu0 0
    %858 = vmatpush1.bf16.msra.mxu0 0
    %859 = vmatprep.subr.bf16.mxu0 0
    %860 = vmatpush1.bf16.msra.mxu0 0
    %861 = vmatprep.subr.bf16.mxu0 0
    %862 = vmatpush1.bf16.msra.mxu0 0
    %863 = vmatprep.subr.bf16.mxu0 0
    %864 = vmatpush1.bf16.msra.mxu0 0
    %865 = vmatprep.subr.bf16.mxu0 0
    %866 = vmatpush1.bf16.msra.mxu0 0
    %867 = vmatprep.subr.bf16.mxu0 0
    %868 = vmatpush1.bf16.msra.mxu0 0
    %869 = vmatprep.subr.bf16.mxu0 0
    %870 = vmatpush1.bf16.msra.mxu0 0
    %871 = vmatprep.subr.bf16.mxu0 0
    %872 = vmatpush1.bf16.msra.mxu0 0
    %873 = vmatprep.subr.bf16.mxu0 0
    %874 = vmatpush1.bf16.msra.mxu0 0
    %875 = vmatprep.subr.bf16.mxu0 0
    %876 = vmatpush1.bf16.msra.mxu0 0
    %877 = vmatprep.subr.bf16.mxu0 0
    %878 = vmatpush1.bf16.msra.mxu0 0
    %879 = vmatprep.subr.bf16.mxu0 0
    %880 = vmatpush1.bf16.msra.mxu0 0
    %881 = vmatprep.subr.bf16.mxu0 0
    %882 = vmatpush1.bf16.msra.mxu0 0
    %883 = vmatprep.subr.bf16.mxu0 0
    %884 = vmatpush1.bf16.msra.mxu0 0
    %885 = vmatprep.mubr.bf16.mxu0 0
    %886 = vmatmul.mubr.bf16.gmra.mrb[0].mxu0 %v851
    %v887 = vpop.f32.mrb[0].mxu0
    %v888 = vadd.f32 %v41, %v887
    %v889 = vpop.f32.mrb[0].mxu0
    %v890 = vpop.f32.mrb[0].mxu0
    %v891 = vpop.f32.mrb[0].mxu0
    %892 = vdwg.mxu0
    %v894 = vrot.slane %v888, 1
    %v897 = vadd.f32 %v843, %v888
    %v898 = vadd.f32 %v844, %v894
    %v899 = vxor.u32 %v897, 2147483648
    %v900 = vxor.u32 %v898, 2147483648
    %v901 = vmul.f32 %v899, 1.442695
    %v902 = vpow.pop %v901
    %v903 = vmul.f32 %v900, 1.442695
    %v904 = vpow.pop %v903
    %v905 = vadd.f32 %v902, 1.0
    %v906 = vadd.f32 %v904, 1.0
    %v907 = vrcp.pop %v905
    %v908 = vmul.f32 1.0, %v907
    %v909 = vrcp.pop %v906
    %v910 = vmul.f32 1.0, %v909
    %911 = vrot.lane.b32.xlu0 %v888, 64
    %v912 = vpop.permute.xlu0 %911
    %913 = vrot.lane.b32.xlu0 %v894, 64
    %v914 = vpop.permute.xlu0 %913
    %v917 = vmul.f32 %v908, %v912
    %v918 = vmul.f32 %v910, %v914
    %921 = vrot.lane.b32.xlu0 %v917, 64
    %v922 = vpop.permute.xlu0 %921
    %923 = vrot.lane.b32.xlu0 %v918, 64
    %v924 = vpop.permute.xlu0 %923
    %v927 = vadd.f32 %v843, %v922
    %v928 = vadd.f32 %v844, %v924
    %v929 = vtanh.pop %v927
    %v930 = vtanh.pop %v928
    %v931 = vsub.f32 1.0, %v908
    %v932 = vsub.f32 1.0, %v910
    %935 = vrot.lane.b32.xlu0 %v929, 96
    %v936 = vpop.permute.xlu0 %935
    %937 = vrot.lane.b32.xlu0 %v930, 96
    %v938 = vpop.permute.xlu0 %937
    %v941 = vmul.f32 %v931, %v936
    %v942 = vmul.f32 %v932, %v938
    %v943 = vmul.f32 %v908, %v811
    %v944 = vmul.f32 %v910, %v812
    %v945 = vadd.f32 %v941, %v943
    %v946 = vadd.f32 %v942, %v944
    %v947 = vpack.c.bf16 %v945, %v945
    %v948 = vpack.c.bf16 %v946, %v946
    %v951 = vunpack.c.l.b16 %v947
    %v952 = vunpack.c.l.b16 %v948
    %v953 = vpack.c.b16 %v951, %v951
    %v954 = vpack.c.b16 %v952, %v952
    %v955 = vrot.slane %v953, 5
    %v956 = vrot.slane %v954, 5
    %957 = vrot.lane.b32.xlu0 %v955, 96
    %v958 = vpop.permute.xlu0 %957
    %959 = vrot.lane.b32.xlu0 %v956, 96
    %v960 = vpop.permute.xlu0 %959
    %vm963 = vcmask 257027
    %vm964 = vsmask.f32 3328
    %vm965 = vmand %vm963, %vm964
    %v966 = vld [vmem:[%s4] sm:$0x8]
    %v967 = vsel %vm965, %v958, %v966
    %968 = vst [vmem:[%s4] sm:$0x8] %v967
    %v969 = vld [vmem:[%s4 + $0x4] sm:$0x8]
    %v970 = vsel %vm965, %v960, %v969
    %971 = vst [vmem:[%s4 + $0x4] sm:$0x8] %v970
    %v972 = vld [vmem:[%s0 + $0x7] sm:$0x1]
    %v973 = vld [vmem:[%s0 + $0xf] sm:$0x1]
    %v974 = vrot.slane %v952, 7
    %v975 = vsel %vm187, %v974, %v951
    %v976 = vpack.c.b16 %v975, %v975
    %977 = vrot.lane.b32.xlu0 %v976, 96
    %v978 = vpop.permute.xlu0 %977
    %v980 = vsel %vm55, %v978, 0
    %982 = vmatprep.subr.bf16.mxu0 0
    %983 = vmatpush1.bf16.msra.mxu0 %v51
    %984 = vmatprep.subr.bf16.mxu0 0
    %985 = vmatpush1.bf16.msra.mxu0 %v52
    %986 = vmatprep.subr.bf16.mxu0 0
    %987 = vmatpush1.bf16.msra.mxu0 0
    %988 = vmatprep.subr.bf16.mxu0 0
    %989 = vmatpush1.bf16.msra.mxu0 0
    %990 = vmatprep.subr.bf16.mxu0 0
    %991 = vmatpush1.bf16.msra.mxu0 0
    %992 = vmatprep.subr.bf16.mxu0 0
    %993 = vmatpush1.bf16.msra.mxu0 0
    %994 = vmatprep.subr.bf16.mxu0 0
    %995 = vmatpush1.bf16.msra.mxu0 0
    %996 = vmatprep.subr.bf16.mxu0 0
    %997 = vmatpush1.bf16.msra.mxu0 0
    %998 = vmatprep.subr.bf16.mxu0 0
    %999 = vmatpush1.bf16.msra.mxu0 0
    %1000 = vmatprep.subr.bf16.mxu0 0
    %1001 = vmatpush1.bf16.msra.mxu0 0
    %1002 = vmatprep.subr.bf16.mxu0 0
    %1003 = vmatpush1.bf16.msra.mxu0 0
    %1004 = vmatprep.subr.bf16.mxu0 0
    %1005 = vmatpush1.bf16.msra.mxu0 0
    %1006 = vmatprep.subr.bf16.mxu0 0
    %1007 = vmatpush1.bf16.msra.mxu0 0
    %1008 = vmatprep.subr.bf16.mxu0 0
    %1009 = vmatpush1.bf16.msra.mxu0 0
    %1010 = vmatprep.subr.bf16.mxu0 0
    %1011 = vmatpush1.bf16.msra.mxu0 0
    %1012 = vmatprep.subr.bf16.mxu0 0
    %1013 = vmatpush1.bf16.msra.mxu0 0
    %1014 = vmatprep.mubr.bf16.mxu0 0
    %1015 = vmatmul.mubr.bf16.gmra.mrb[0].mxu0 %v980
    %v1016 = vpop.f32.mrb[0].mxu0
    %v1017 = vadd.f32 %v41, %v1016
    %v1018 = vpop.f32.mrb[0].mxu0
    %v1019 = vpop.f32.mrb[0].mxu0
    %v1020 = vpop.f32.mrb[0].mxu0
    %1021 = vdwg.mxu0
    %v1023 = vrot.slane %v1017, 1
    %v1026 = vadd.f32 %v972, %v1017
    %v1027 = vadd.f32 %v973, %v1023
    %v1028 = vxor.u32 %v1026, 2147483648
    %v1029 = vxor.u32 %v1027, 2147483648
    %v1030 = vmul.f32 %v1028, 1.442695
    %v1031 = vpow.pop %v1030
    %v1032 = vmul.f32 %v1029, 1.442695
    %v1033 = vpow.pop %v1032
    %v1034 = vadd.f32 %v1031, 1.0
    %v1035 = vadd.f32 %v1033, 1.0
    %v1036 = vrcp.pop %v1034
    %v1037 = vmul.f32 1.0, %v1036
    %v1038 = vrcp.pop %v1035
    %v1039 = vmul.f32 1.0, %v1038
    %1040 = vrot.lane.b32.xlu0 %v1017, 64
    %v1041 = vpop.permute.xlu0 %1040
    %1042 = vrot.lane.b32.xlu0 %v1023, 64
    %v1043 = vpop.permute.xlu0 %1042
    %v1046 = vmul.f32 %v1037, %v1041
    %v1047 = vmul.f32 %v1039, %v1043
    %1050 = vrot.lane.b32.xlu0 %v1046, 64
    %v1051 = vpop.permute.xlu0 %1050
    %1052 = vrot.lane.b32.xlu0 %v1047, 64
    %v1053 = vpop.permute.xlu0 %1052
    %v1056 = vadd.f32 %v972, %v1051
    %v1057 = vadd.f32 %v973, %v1053
    %v1058 = vtanh.pop %v1056
    %v1059 = vtanh.pop %v1057
    %v1060 = vsub.f32 1.0, %v1037
    %v1061 = vsub.f32 1.0, %v1039
    %1064 = vrot.lane.b32.xlu0 %v1058, 96
    %v1065 = vpop.permute.xlu0 %1064
    %1066 = vrot.lane.b32.xlu0 %v1059, 96
    %v1067 = vpop.permute.xlu0 %1066
    %v1070 = vmul.f32 %v1060, %v1065
    %v1071 = vmul.f32 %v1061, %v1067
    %v1072 = vmul.f32 %v1037, %v945
    %v1073 = vmul.f32 %v1039, %v946
    %v1074 = vadd.f32 %v1070, %v1072
    %v1075 = vadd.f32 %v1071, %v1073
    %v1076 = vpack.c.bf16 %v1074, %v1074
    %v1077 = vpack.c.bf16 %v1075, %v1075
    %v1080 = vunpack.c.l.b16 %v1076
    %v1081 = vunpack.c.l.b16 %v1077
    %v1082 = vpack.c.b16 %v1080, %v1080
    %v1083 = vpack.c.b16 %v1081, %v1081
    %v1085 = vshll.u32 %v1082, 16
    %v1087 = vrot.slane %v1085, 5
    %v1089 = vshll.u32 %v1083, 16
    %v1091 = vrot.slane %v1089, 5
    %1092 = vrot.lane.b32.xlu0 %v1087, 96
    %v1093 = vpop.permute.xlu0 %1092
    %1094 = vrot.lane.b32.xlu0 %v1091, 96
    %v1095 = vpop.permute.xlu0 %1094
    %vm1098 = vsmask.f32 7950
    %vm1099 = vmand %vm963, %vm1098
    %v1100 = vld [vmem:[%s4] sm:$0x8]
    %v1101 = vsel %vm1099, %v1093, %v1100
    %1102 = vst [vmem:[%s4] sm:$0x8] %v1101
    %v1103 = vld [vmem:[%s4 + $0x4] sm:$0x8]
    %v1104 = vsel %vm1099, %v1095, %v1103
    %1105 = vst [vmem:[%s4 + $0x4] sm:$0x8] %v1104
    %v1108 = vrot.slane %v1075, 7
    %v1109 = vsel %vm187, %v1108, %v1074
    %1110 = vrot.lane.b32.xlu0 %v1109, 96
    %v1111 = vpop.permute.xlu0 %1110
    %vm1113 = vcmask 254976
    %1114 = vst.msk [vmem:[#allocation2] sm:$0x3] %vm1113, %v1111
    // Predicated region
    $region22: #{decoder_forward.8} parent=1 // pred_check
      %p1115 = pneg %p21
    $region23: #{decoder_forward.8} parent=1 // pred_check_branch
      %1117 = sbr.rel (%p1115) target = $region25
    $region24: #{decoder_forward.8} parent=1 // pred_region
      %1118 = vst.msk [vmem:[#allocation3] sm:$0x3] %vm1113, %v1111
    $region25: #{decoder_forward.8} parent=1 // pred_fallthru
      _
    // Predicated region
    $region26: #{decoder_forward.8} parent=1 // pred_check
      _
    $region27: #{decoder_forward.8} parent=1 // pred_check_branch
      %1120 = sbr.rel (0) target = $region29
    $region28: #{decoder_forward.8} parent=1 // pred_region
      _
    $region29: #{decoder_forward.8} parent=1 // pred_fallthru
      _
    // Predicated region
    $region30: #{decoder_forward.8} parent=1 // pred_check
      _
    $region31: #{decoder_forward.8} parent=1 // pred_check_branch
      %1122 = sbr.rel (0) target = $region33
    $region32: #{decoder_forward.8} parent=1 // pred_region
      %s1124 = ssub.s32 32, 32
      %1125 = vsyncadd [#allocation4], %s1124
      %s1127 = sshll.u32 [#allocation3], 4
      %s1128 = int_to_ptr.vmem [resolvable:$true] %s1127
      %1130 = dma.vmem_to_hbm [thread:$0]  %s1128, 32, %s5, [#allocation4]
    $region33: #{decoder_forward.8} parent=1 // pred_fallthru
      _
    // Predicated region
    $region34: #{decoder_forward.8} parent=1 // pred_check
      _
    $region35: #{decoder_forward.8} parent=1 // pred_check_branch
      %1132 = sbr.rel (0) target = $region37
    $region36: #{decoder_forward.8} parent=1 // pred_region
      _
    $region37: #{decoder_forward.8} parent=1 // pred_fallthru
      _
    // Predicated region
    $region38: #{decoder_forward.8} parent=1 // pred_check
      _
    $region39: #{decoder_forward.8} parent=1 // pred_check_branch
      %1134 = sbr.rel (0) target = $region41
    $region40: #{decoder_forward.8} parent=1 // pred_region
      %1135 = dma.done [#allocation4], 32
    $region41: #{decoder_forward.8} parent=1 // pred_fallthru
      _
    %1136 = vsyncpa [#allocation4], 1

// kernel: decoder_forward.11
$region0: #{decoder_forward.11}
  #allocation0 [shape = 'u32[]', space=smem, size = 0x4, offset = 0x4, fixed_abs, tag = 'smem constant byte address 0x4 - core index']
  #allocation1 [shape = 'u32[144,128]{1,0:T(1,128)}', space=vmem, size = 0x12000, scoped, tag = 'internal scratch']
  %s0 = inlined_call_operand.vmem [shape: bf16[16,32], index: 0, kind: input, shape index: {}]
  %s1 = inlined_call_operand.vmem [shape: bf16[32,16], index: 1, kind: input, shape index: {}]
  %s2 = inlined_call_operand.vmem [shape: f32[1,16], index: 2, kind: input, shape index: {}]
  %s3 = inlined_call_operand.hbm [shape: f32[16,16], index: 3, kind: output, shape index: {}]
  %s4 = sld [smem:[#allocation0]]
  $region22: #{decoder_forward.11} parent=0
    _
  %s6 = ssub.s32 1, %s4
  %s7 = scalar_select 0, %s6, %s4
  $region1: #{decoder_forward.11} parent=0
    #allocation2 [shape = 'u8[8192]{0}', space=vmem, size = 0x2000, scoped, tag = 'output window, operand 0, single buffered']
    #allocation3 [shape = 's32[1]{0}', space=sflag, size = 0x4, scoped, tag = 'scoped memory for decoder_forward.11']
    %8 = vsyncpa [#allocation3], 0
    // Predicated region
    $region2: #{decoder_forward.11} parent=1 // pred_check
      _
    $region3: #{decoder_forward.11} parent=1 // pred_check_branch
      %10 = sbr.rel (0) target = $region5
    $region4: #{decoder_forward.11} parent=1 // pred_region
      _
    $region5: #{decoder_forward.11} parent=1 // pred_fallthru
      _
    // Predicated region
    $region6: #{decoder_forward.11} parent=1 // pred_check
      _
    $region7: #{decoder_forward.11} parent=1 // pred_check_branch
      %12 = sbr.rel (0) target = $region9
    $region8: #{decoder_forward.11} parent=1 // pred_region
      _
    $region9: #{decoder_forward.11} parent=1 // pred_fallthru
      _
    // Predicated region
    $region10: #{decoder_forward.11} parent=1 // pred_check
      _
    $region11: #{decoder_forward.11} parent=1 // pred_check_branch
      %14 = sbr.rel (0) target = $region13
    $region12: #{decoder_forward.11} parent=1 // pred_region
      _
    $region13: #{decoder_forward.11} parent=1 // pred_fallthru
      _
    %v16 = vld [vmem:[%s0] sm:$0xf]
    %v17 = vld [vmem:[%s0 + $0x4] sm:$0xf]
    %v18 = vld [vmem:[%s1] sm:$0xf]
    %v19 = vld [vmem:[%s1 + $0x4] sm:$0xf]
    %v20 = vld [vmem:[%s1 + $0x8] sm:$0xf]
    %v21 = vld [vmem:[%s1 + $0xc] sm:$0xf]
    %v22 = vld [vmem:[%s2] sm:$0x1]
    %v24 = vlaneseq
    %v25 = vshrl.u32 %v24, 7
    %v26 = vsub.s32 0, %v25
    %v27 = vrot.slane %v22, %v26
    %v31 = vunpack.c.l.b16 %v16
    %v32 = vunpack.c.l.b16 %v17
    %v33 = vpack.c.b16 %v32, %v31
    %v38 = vunpack.c.l.b16 %v18
    %v39 = vunpack.c.l.b16 %v19
    %v40 = vunpack.c.l.b16 %v20
    %v41 = vunpack.c.l.b16 %v21
    %v42 = vpack.c.b16 %v39, %v38
    %v43 = vpack.c.b16 %v41, %v40
    %vm46 = vcmask 261120
    %v48 = vsel %vm46, %v33, 0
    %50 = vmatprep.subr.bf16.mxu0 0
    %51 = vmatpush1.bf16.msra.mxu0 %v42
    %52 = vmatprep.subr.bf16.mxu0 0
    %53 = vmatpush1.bf16.msra.mxu0 %v43
    %54 = vmatprep.subr.bf16.mxu0 0
    %55 = vmatpush1.bf16.msra.mxu0 0
    %56 = vmatprep.subr.bf16.mxu0 0
    %57 = vmatpush1.bf16.msra.mxu0 0
    %58 = vmatprep.subr.bf16.mxu0 0
    %59 = vmatpush1.bf16.msra.mxu0 0
    %60 = vmatprep.subr.bf16.mxu0 0
    %61 = vmatpush1.bf16.msra.mxu0 0
    %62 = vmatprep.subr.bf16.mxu0 0
    %63 = vmatpush1.bf16.msra.mxu0 0
    %64 = vmatprep.subr.bf16.mxu0 0
    %65 = vmatpush1.bf16.msra.mxu0 0
    %66 = vmatprep.subr.bf16.mxu0 0
    %67 = vmatpush1.bf16.msra.mxu0 0
    %68 = vmatprep.subr.bf16.mxu0 0
    %69 = vmatpush1.bf16.msra.mxu0 0
    %70 = vmatprep.subr.bf16.mxu0 0
    %71 = vmatpush1.bf16.msra.mxu0 0
    %72 = vmatprep.subr.bf16.mxu0 0
    %73 = vmatpush1.bf16.msra.mxu0 0
    %74 = vmatprep.subr.bf16.mxu0 0
    %75 = vmatpush1.bf16.msra.mxu0 0
    %76 = vmatprep.subr.bf16.mxu0 0
    %77 = vmatpush1.bf16.msra.mxu0 0
    %78 = vmatprep.subr.bf16.mxu0 0
    %79 = vmatpush1.bf16.msra.mxu0 0
    %80 = vmatprep.subr.bf16.mxu0 0
    %81 = vmatpush1.bf16.msra.mxu0 0
    %82 = vmatprep.mubr.bf16.mxu0 0
    %83 = vmatmul.mubr.bf16.gmra.mrb[0].mxu0 %v48
    %v84 = vpop.f32.mrb[0].mxu0
    %v85 = vadd.f32 %v27, %v84
    %v86 = vpop.f32.mrb[0].mxu0
    %v87 = vpop.f32.mrb[0].mxu0
    %v88 = vadd.f32 %v27, %v87
    %v89 = vpop.f32.mrb[0].mxu0
    %90 = vdwg.mxu0
    %vm91 = vcmask 130048
    %v92 = vsel %vm91, %v85, -inf
    %93 = vmax.xlane.f32.xlu0 %v92
    %v94 = vpop.xlane.xlu0 %93
    %v95 = vsel %vm91, %v88, -inf
    %96 = vmax.xlane.f32.xlu0 %v95
    %v97 = vpop.xlane.xlu0 %96
    %v98 = vsub.f32 %v85, %v94
    %v99 = vsub.f32 %v88, %v97
    %v100 = vmul.f32 %v98, 1.442695
    %v101 = vpow.pop %v100
    %v102 = vmul.f32 %v99, 1.442695
    %v103 = vpow.pop %v102
    %v104 = vsel %vm91, %v101, 0.0
    %105 = vadd.xlane.f32.xlu0 %v104
    %v106 = vpop.xlane.xlu0 %105
    %v107 = vsel %vm91, %v103, 0.0
    %108 = vadd.xlane.f32.xlu0 %v107
    %v109 = vpop.xlane.xlu0 %108
    %v110 = vrcp.pop %v106
    %v111 = vmul.f32 %v101, %v110
    %v112 = vrcp.pop %v109
    %v113 = vmul.f32 %v103, %v112
    %114 = vst.msk [vmem:[#allocation2] sm:$0xff] %vm91, %v111
    %115 = vst.msk [vmem:[#allocation2 + $0x8] sm:$0xff] %vm91, %v113
    // Predicated region
    $region14: #{decoder_forward.11} parent=1 // pred_check
      _
    $region15: #{decoder_forward.11} parent=1 // pred_check_branch
      %117 = sbr.rel (0) target = $region17
    $region16: #{decoder_forward.11} parent=1 // pred_region
      %s119 = ssub.s32 256, 256
      %120 = vsyncadd [#allocation3], %s119
      %s121 = sshll.u32 [#allocation2], 4
      %s122 = int_to_ptr.vmem [resolvable:$true] %s121
      %127 = dma.vmem_to_hbm [thread:$0]  %s122, 256, %s3, [#allocation3], 128, 128, 8
    $region17: #{decoder_forward.11} parent=1 // pred_fallthru
      _
    // Predicated region
    $region18: #{decoder_forward.11} parent=1 // pred_check
      _
    $region19: #{decoder_forward.11} parent=1 // pred_check_branch
      %129 = sbr.rel (0) target = $region21
    $region20: #{decoder_forward.11} parent=1 // pred_region
      %130 = dma.done [#allocation3], 256
    $region21: #{decoder_forward.11} parent=1 // pred_fallthru
      _
    %131 = vsyncpa [#allocation3], 1

// kernel: decoder_forward.9
$region0: #{decoder_forward.9}
  #allocation0 [shape = 'u32[]', space=smem, size = 0x4, offset = 0x4, fixed_abs, tag = 'smem constant byte address 0x4 - core index']
  #allocation1 [shape = 'u32[144,128]{1,0:T(1,128)}', space=vmem, size = 0x12000, scoped, tag = 'internal scratch']
  #allocation2 [shape = 'f32[16,96]{1,0:T(8,128)}', space=vmem, size = 0x2000, scoped, tag = 'scratch operand']
  %s0 = inlined_call_operand.vmem [shape: bf16[16,32], index: 0, kind: input, shape index: {}]
  %s1 = inlined_call_operand.vmem [shape: bf16[32,96], index: 1, kind: input, shape index: {}]
  %s2 = inlined_call_operand.vmem [shape: f32[1,96], index: 2, kind: input, shape index: {}]
  %s3 = inlined_call_operand.vmem [shape: f32[16,96], index: 3, kind: output, shape index: {}]
  %s4 = sld [smem:[#allocation0]]
  $region30: #{decoder_forward.9} parent=0
    _
  %s6 = ssub.s32 1, %s4
  %s7 = scalar_select 0, %s6, %s4
  // Predicated region
  $region2: #{decoder_forward.9} parent=0 // pred_check
    _
  $region3: #{decoder_forward.9} parent=0 // pred_check_branch
    %9 = sbr.rel (0) target = $region5
  $region4: #{decoder_forward.9} parent=0 // pred_region
    _
  $region5: #{decoder_forward.9} parent=0 // pred_fallthru
    _
  // Predicated region
  $region6: #{decoder_forward.9} parent=0 // pred_check
    _
  $region7: #{decoder_forward.9} parent=0 // pred_check_branch
    %11 = sbr.rel (0) target = $region9
  $region8: #{decoder_forward.9} parent=0 // pred_region
    _
  $region9: #{decoder_forward.9} parent=0 // pred_fallthru
    _
  // Predicated region
  $region10: #{decoder_forward.9} parent=0 // pred_check
    _
  $region11: #{decoder_forward.9} parent=0 // pred_check_branch
    %13 = sbr.rel (0) target = $region13
  $region12: #{decoder_forward.9} parent=0 // pred_region
    _
  $region13: #{decoder_forward.9} parent=0 // pred_fallthru
    _
  %p15 = scmp.eq.s32.totalorder 0, 0
  // Predicated region
  $region14: #{decoder_forward.9} parent=0 // pred_check
    %p16 = pneg %p15
  $region15: #{decoder_forward.9} parent=0 // pred_check_branch
    %18 = sbr.rel (%p16) target = $region17
  $region16: #{decoder_forward.9} parent=0 // pred_region
    %vm19 = vcmask 785408
    %20 = vst.msk [vmem:[#allocation2] sm:$0xff] %vm19, 0.0
    %21 = vst.msk [vmem:[#allocation2 + $0x8] sm:$0xff] %vm19, 0.0
  $region17: #{decoder_forward.9} parent=0 // pred_fallthru
    _
  %v22 = vld [vmem:[#allocation2] sm:$0xff]
  %v23 = vld [vmem:[#allocation2 + $0x8] sm:$0xff]
  %v24 = vld [vmem:[%s0] sm:$0xf]
  %v25 = vld [vmem:[%s0 + $0x4] sm:$0xf]
  %v26 = vld [vmem:[%s1] sm:$0xf]
  %v27 = vld [vmem:[%s1 + $0x4] sm:$0xf]
  %v28 = vld [vmem:[%s1 + $0x8] sm:$0xf]
  %v29 = vld [vmem:[%s1 + $0xc] sm:$0xf]
  %v32 = vunpack.c.l.b16 %v24
  %v33 = vunpack.c.l.b16 %v25
  %v34 = vpack.c.b16 %v33, %v32
  %v39 = vunpack.c.l.b16 %v26
  %v40 = vunpack.c.l.b16 %v27
  %v41 = vunpack.c.l.b16 %v28
  %v42 = vunpack.c.l.b16 %v29
  %v43 = vpack.c.b16 %v40, %v39
  %v44 = vpack.c.b16 %v42, %v41
  %vm47 = vcmask 261120
  %v49 = vsel %vm47, %v34, 0
  %51 = vmatprep.subr.bf16.mxu0 0
  %52 = vmatpush1.bf16.msra.mxu0 %v43
  %53 = vmatprep.subr.bf16.mxu0 0
  %54 = vmatpush1.bf16.msra.mxu0 %v44
  %55 = vmatprep.subr.bf16.mxu0 0
  %56 = vmatpush1.bf16.msra.mxu0 0
  %57 = vmatprep.subr.bf16.mxu0 0
  %58 = vmatpush1.bf16.msra.mxu0 0
  %59 = vmatprep.subr.bf16.mxu0 0
  %60 = vmatpush1.bf16.msra.mxu0 0
  %61 = vmatprep.subr.bf16.mxu0 0
  %62 = vmatpush1.bf16.msra.mxu0 0
  %63 = vmatprep.subr.bf16.mxu0 0
  %64 = vmatpush1.bf16.msra.mxu0 0
  %65 = vmatprep.subr.bf16.mxu0 0
  %66 = vmatpush1.bf16.msra.mxu0 0
  %67 = vmatprep.subr.bf16.mxu0 0
  %68 = vmatpush1.bf16.msra.mxu0 0
  %69 = vmatprep.subr.bf16.mxu0 0
  %70 = vmatpush1.bf16.msra.mxu0 0
  %71 = vmatprep.subr.bf16.mxu0 0
  %72 = vmatpush1.bf16.msra.mxu0 0
  %73 = vmatprep.subr.bf16.mxu0 0
  %74 = vmatpush1.bf16.msra.mxu0 0
  %75 = vmatprep.subr.bf16.mxu0 0
  %76 = vmatpush1.bf16.msra.mxu0 0
  %77 = vmatprep.subr.bf16.mxu0 0
  %78 = vmatpush1.bf16.msra.mxu0 0
  %79 = vmatprep.subr.bf16.mxu0 0
  %80 = vmatpush1.bf16.msra.mxu0 0
  %81 = vmatprep.subr.bf16.mxu0 0
  %82 = vmatpush1.bf16.msra.mxu0 0
  %83 = vmatprep.mubr.bf16.mxu0 0
  %84 = vmatmul.mubr.bf16.gmra.mrb[0].mxu0 %v49
  %v85 = vpop.f32.mrb[0].mxu0
  %v86 = vadd.f32 0.0, %v85
  %v87 = vpop.f32.mrb[0].mxu0
  %v88 = vpop.f32.mrb[0].mxu0
  %v89 = vadd.f32 0.0, %v88
  %v90 = vpop.f32.mrb[0].mxu0
  %91 = vdwg.mxu0
  %v92 = vadd.f32 %v22, %v86
  %v93 = vadd.f32 %v23, %v89
  %vm94 = vcmask 785408
  %95 = vst.msk [vmem:[#allocation2] sm:$0xff] %vm94, %v92
  %96 = vst.msk [vmem:[#allocation2 + $0x8] sm:$0xff] %vm94, %v93
  // Predicated region
  $region18: #{decoder_forward.9} parent=0 // pred_check
    %p97 = pneg %p15
  $region19: #{decoder_forward.9} parent=0 // pred_check_branch
    %99 = sbr.rel (%p97) target = $region21
  $region20: #{decoder_forward.9} parent=0 // pred_region
    %v100 = vld [vmem:[#allocation2] sm:$0xff]
    %v101 = vld [vmem:[#allocation2 + $0x8] sm:$0xff]
    %v102 = vld [vmem:[%s2] sm:$0x1]
    %v104 = vlaneseq
    %v105 = vshrl.u32 %v104, 7
    %v106 = vsub.s32 0, %v105
    %v107 = vrot.slane %v102, %v106
    %v109 = vadd.f32 %v100, %v107
    %v110 = vadd.f32 %v101, %v107
    %111 = vst.msk [vmem:[%s3] sm:$0xff] %vm94, %v109
    %112 = vst.msk [vmem:[%s3 + $0x8] sm:$0xff] %vm94, %v110
  $region21: #{decoder_forward.9} parent=0 // pred_fallthru
    _
  // Predicated region
  $region22: #{decoder_forward.9} parent=0 // pred_check
    _
  $region23: #{decoder_forward.9} parent=0 // pred_check_branch
    %114 = sbr.rel (0) target = $region25
  $region24: #{decoder_forward.9} parent=0 // pred_region
    _
  $region25: #{decoder_forward.9} parent=0 // pred_fallthru
    _
  // Predicated region
  $region26: #{decoder_forward.9} parent=0 // pred_check
    _
  $region27: #{decoder_forward.9} parent=0 // pred_check_branch
    %116 = sbr.rel (0) target = $region29
  $region28: #{decoder_forward.9} parent=0 // pred_region
    _
  $region29: #{decoder_forward.9} parent=0 // pred_fallthru
    _

</llo_original>
